<compile_context>
chip_gen: v7x
topology: tpu7x:2x2x1
jax: 0.10.0
libtpu: 0.0.40
codegen_flags: <defaults>
</compile_context>

<pallas_src>
import math

import jax
import jax.numpy as jnp
from jax.experimental import pallas as pl
from jax.experimental.pallas import tpu as pltpu

# ---- synthetic BERT config (small) ----
HIDDEN = 32
N_HEADS = 2
HEAD_DIM = HIDDEN // N_HEADS
FFN = 64
N_LAYERS = 2
VOCAB = 64
MAX_POS = 16
TYPE_VOCAB = 2
N_CLASS = 2
SEQ = 8
BATCH = 2
LN_EPS = 1e-12

HPAD = 128                     # lane slot per (tensor, head) segment & classifier pad
BS = BATCH * SEQ               # rows of the hidden-state tile
NBS = N_HEADS * BATCH * SEQ    # rows of the head-stacked attention tile


# ---------------- fused Pallas kernel ----------------

def _layernorm(x, g, b):
    mean = jnp.mean(x, axis=-1, keepdims=True)
    var = jnp.mean((x - mean) * (x - mean), axis=-1, keepdims=True)
    return (x - mean) * jax.lax.rsqrt(var + jnp.float32(LN_EPS)) * g + b


def _gelu_exact(y):
    # HF BERT default: exact erf-GELU.
    return 0.5 * y * (1.0 + jax.lax.erf(y * jnp.float32(1.0 / math.sqrt(2.0))))


def _bert_fused_kernel(x_ref, bias_ref, qkv_w_ref, ao_w_ref, fi_w_ref, fo_w_ref,
                       vec_ref, wide_ref, head_w_ref, logits_ref):
    """Entire BertClassify forward (post-embedding) — activations never leave VMEM."""
    scale = jnp.float32(1.0 / math.sqrt(HEAD_DIM))
    attn_bias = bias_ref[...]                                     # (NBS, NBS) additive

    h = _layernorm(x_ref[...], vec_ref[0:1, :], vec_ref[1:2, :])  # (BS, H)

    for li in range(N_LAYERS):                                    # static unroll (L=2)
        vb = 2 + li * 6                                           # this layer's vec rows

        # --- fused QKV projection: each (tensor, head) segment owns a 128-lane slot so
        #     every later slice is tile-aligned (padded lanes are zero => free on MXU).
        qkv = (jnp.dot(h, qkv_w_ref[li], preferred_element_type=jnp.float32)
               + wide_ref[li:li + 1, :])                          # (BS, 3*NH*128)

        def seg(t, hh):
            c = (t * N_HEADS + hh) * HPAD
            return qkv[:, c:c + HPAD]                             # (BS, 128)

        # stack heads along sublanes: rows ordered (head, batch, seq)
        q_st = jnp.concatenate([seg(0, hh) for hh in range(N_HEADS)], axis=0)  # (NBS,128)
        k_st = jnp.concatenate([seg(1, hh) for hh in range(N_HEADS)], axis=0)
        v_st = jnp.concatenate([seg(2, hh) for hh in range(N_HEADS)], axis=0)

        # --- single block-masked attention matmul pair (bias added BEFORE max/exp) ---
        s = jax.lax.dot_general(q_st, k_st, (((1,), (1,)), ((), ())),
                                preferred_element_type=jnp.float32)            # (NBS,NBS)
        s = s * scale + attn_bias
        s = s - jnp.max(s, axis=-1, keepdims=True)
        p = jnp.exp(s)
        inv = pl.reciprocal(jnp.sum(p, axis=-1, keepdims=True), approx=False)
        p = p * inv
        ctx_st = jnp.dot(p, v_st, preferred_element_type=jnp.float32)          # (NBS,128)

        # un-stack heads back onto lanes (8-aligned row slices, 128-aligned lane concat)
        ctx = jnp.concatenate(
            [ctx_st[hh * BS:(hh + 1) * BS, :] for hh in range(N_HEADS)], axis=1)  # (BS, NH*128)

        # --- attention output projection (weights re-indexed to padded ctx layout);
        #     residual folded into LN.
        attn_out = (jnp.dot(ctx, ao_w_ref[li], preferred_element_type=jnp.float32)
                    + vec_ref[vb + 0:vb + 1, :])
        h = _layernorm(attn_out + h, vec_ref[vb + 1:vb + 2, :], vec_ref[vb + 2:vb + 3, :])

        # --- FFN (exact erf-GELU); residual folded into LN ---
        ffn = _gelu_exact(jnp.dot(h, fi_w_ref[li], preferred_element_type=jnp.float32)
                          + wide_ref[N_LAYERS + li:N_LAYERS + li + 1, :FFN])
        ffn = (jnp.dot(ffn, fo_w_ref[li], preferred_element_type=jnp.float32)
               + vec_ref[vb + 3:vb + 4, :])
        h = _layernorm(ffn + h, vec_ref[vb + 4:vb + 5, :], vec_ref[vb + 5:vb + 6, :])

    # --- pooler on the [CLS] rows (one-hot selection matmul), then classifier head ---
    rr = jax.lax.broadcasted_iota(jnp.int32, (BATCH, BS), 0)
    cc = jax.lax.broadcasted_iota(jnp.int32, (BATCH, BS), 1)
    sel = (cc == rr * SEQ).astype(jnp.float32)                     # (B, BS): picks row b*SEQ
    cls_tok = jnp.dot(sel, h, preferred_element_type=jnp.float32)  # (B, H)

    pool_w = head_w_ref[:, 0:HIDDEN]                               # (H, H), lane offset 0
    cls_w = head_w_ref[:, HPAD:2 * HPAD]                           # (H, 128), zero-padded
    pooled = jnp.tanh(jnp.dot(cls_tok, pool_w, preferred_element_type=jnp.float32)
                      + vec_ref[2 + 6 * N_LAYERS:3 + 6 * N_LAYERS, :])
    # dropout(p=0.5) is identity in eval mode (this is Bert_eval.py)
    logits_ref[...] = (jnp.dot(pooled, cls_w, preferred_element_type=jnp.float32)
                       + wide_ref[2 * N_LAYERS:2 * N_LAYERS + 1, :HPAD]
                       ).astype(logits_ref.dtype)


def _full_spec(shape):
    n = len(shape)
    return pl.BlockSpec(shape, lambda i, _n=n: (0,) * _n)


# ---------------- parameters (synthetic, deterministic) ----------------

def init_params(key):
    def nrm(k, shape, scale=0.02):
        return (scale * jax.random.normal(k, shape)).astype(jnp.float32)

    keys = jax.random.split(key, 8 + N_LAYERS)
    params = {
        "word_emb": nrm(keys[0], (VOCAB, HIDDEN)),
        "pos_emb": nrm(keys[1], (MAX_POS, HIDDEN)),
        "type_emb": nrm(keys[2], (TYPE_VOCAB, HIDDEN)),
        "emb_ln_g": jnp.ones((HIDDEN,), jnp.float32),
        "emb_ln_b": jnp.zeros((HIDDEN,), jnp.float32),
        "pooler_w": nrm(keys[3], (HIDDEN, HIDDEN)),
        "pooler_b": jnp.zeros((HIDDEN,), jnp.float32),
        "cls_w": nrm(keys[4], (HIDDEN, N_CLASS)),   # nn.Linear(hidden, n_class)
        "cls_b": jnp.zeros((N_CLASS,), jnp.float32),
        "layers": [],
    }
    for li in range(N_LAYERS):
        lk = jax.random.split(keys[8 + li], 7)
        params["layers"].append({
            "q_w": nrm(lk[0], (HIDDEN, HIDDEN)), "q_b": jnp.zeros((HIDDEN,), jnp.float32),
            "k_w": nrm(lk[1], (HIDDEN, HIDDEN)), "k_b": jnp.zeros((HIDDEN,), jnp.float32),
            "v_w": nrm(lk[2], (HIDDEN, HIDDEN)), "v_b": jnp.zeros((HIDDEN,), jnp.float32),
            "ao_w": nrm(lk[3], (HIDDEN, HIDDEN)), "ao_b": jnp.zeros((HIDDEN,), jnp.float32),
            "ln1_g": jnp.ones((HIDDEN,), jnp.float32), "ln1_b": jnp.zeros((HIDDEN,), jnp.float32),
            "fi_w": nrm(lk[4], (HIDDEN, FFN)), "fi_b": jnp.zeros((FFN,), jnp.float32),
            "fo_w": nrm(lk[5], (FFN, HIDDEN)), "fo_b": jnp.zeros((HIDDEN,), jnp.float32),
            "ln2_g": jnp.ones((HIDDEN,), jnp.float32), "ln2_b": jnp.zeros((HIDDEN,), jnp.float32),
        })
    return params


def pack_params(params):
    """One-time preprocessing (run at load time, NOT inside the per-call jit):
    fuse QKV, give each (tensor, head) segment a 128-lane slot, re-index the attention
    output weight to that layout, stack per-layer weights, and pack the small vectors."""
    ls = params["layers"]
    D = HEAD_DIM

    def pad_heads_cols(w, b):
        # (H, H) cols ordered (head, d) -> (H, NH*128); each head owns a 128-lane slot.
        w_p = jnp.zeros((HIDDEN, N_HEADS * HPAD), jnp.float32)
        b_p = jnp.zeros((N_HEADS * HPAD,), jnp.float32)
        for hh in range(N_HEADS):
            w_p = w_p.at[:, hh * HPAD:hh * HPAD + D].set(w[:, hh * D:(hh + 1) * D])
            b_p = b_p.at[hh * HPAD:hh * HPAD + D].set(b[hh * D:(hh + 1) * D])
        return w_p, b_p

    qkv_w, ao_w, fi_w, fo_w = [], [], [], []
    qkv_b_rows, fi_b_rows = [], []
    for l in ls:
        qw, qb = pad_heads_cols(l["q_w"], l["q_b"])
        kw, kb = pad_heads_cols(l["k_w"], l["k_b"])
        vw, vb = pad_heads_cols(l["v_w"], l["v_b"])
        qkv_w.append(jnp.concatenate([qw, kw, vw], axis=1))          # (H, 3*NH*128)
        qkv_b_rows.append(jnp.concatenate([qb, kb, vb], axis=0))     # (3*NH*128,)
        ao = jnp.zeros((N_HEADS * HPAD, HIDDEN), jnp.float32)        # rows re-indexed to
        for hh in range(N_HEADS):                                    # the padded ctx layout
            ao = ao.at[hh * HPAD:hh * HPAD + D, :].set(l["ao_w"][hh * D:(hh + 1) * D, :])
        ao_w.append(ao)
        fi_w.append(l["fi_w"])
        fo_w.append(l["fo_w"])
        fi_b_rows.append(l["fi_b"])

    # all (1, HIDDEN)-sized vectors -> one small array, one row each
    vec_rows = [params["emb_ln_g"], params["emb_ln_b"]]
    for l in ls:
        vec_rows += [l["ao_b"], l["ln1_g"], l["ln1_b"], l["fo_b"], l["ln2_g"], l["ln2_b"]]
    vec_rows.append(params["pooler_b"])
    vecs = jnp.stack(vec_rows, axis=0)
    vecs = jnp.pad(vecs, ((0, (-vecs.shape[0]) % 8), (0, 0)))        # (16, H)

    # wide vectors (qkv bias / ffn-in bias / classifier bias) -> one (8, 3*NH*128) array
    wide = jnp.zeros((8, 3 * N_HEADS * HPAD), jnp.float32)
    for li in range(N_LAYERS):
        wide = wide.at[li, :].set(qkv_b_rows[li])
        wide = wide.at[N_LAYERS + li, :FFN].set(fi_b_rows[li])
    wide = wide.at[2 * N_LAYERS, :N_CLASS].set(params["cls_b"])

    # pooler + (lane-padded) classifier weights share one input, each in its own lane slot
    head_w = jnp.zeros((HIDDEN, 2 * HPAD), jnp.float32)
    head_w = head_w.at[:, :HIDDEN].set(params["pooler_w"])
    head_w = head_w.at[:, HPAD:HPAD + N_CLASS].set(params["cls_w"])

    # constant block-diagonal (head, batch) mask; rows/cols ordered (head, batch, seq)
    blk = jnp.arange(NBS) // SEQ
    block_mask = jnp.where(blk[:, None] == blk[None, :], 0.0, -1e9).astype(jnp.float32)

    return {
        "word_emb": params["word_emb"], "pos_emb": params["pos_emb"],
        "type_emb": params["type_emb"],
        "qkv_w": jnp.stack(qkv_w, 0), "ao_w": jnp.stack(ao_w, 0),
        "fi_w": jnp.stack(fi_w, 0), "fo_w": jnp.stack(fo_w, 0),
        "vecs": vecs, "wide": wide, "head_w": head_w, "block_mask": block_mask,
    }


# ---------------- model wrapper ----------------

@jax.jit
def bert_classify_forward(packed, input_ids, attention_mask, token_type_ids):
    B, S = input_ids.shape
    # embedding lookups / mask prep are glue (gathers) outside the kernel
    emb = (packed["word_emb"][input_ids]
           + packed["pos_emb"][jnp.arange(S)][None, :, :]
           + packed["type_emb"][token_type_ids])
    x = emb.reshape(B * S, HIDDEN).astype(jnp.float32)

    # additive attention bias: constant block-diagonal mask + per-call key-padding mask
    pad = (1.0 - attention_mask.astype(jnp.float32)) * jnp.float32(-10000.0)   # (B, S)
    pad_col = jnp.tile(pad.reshape(-1), (N_HEADS,)).reshape(1, NBS)            # cols (h,b,s)
    attn_bias = packed["block_mask"] + pad_col                                 # (NBS, NBS)

    args = (x, attn_bias, packed["qkv_w"], packed["ao_w"], packed["fi_w"],
            packed["fo_w"], packed["vecs"], packed["wide"], packed["head_w"])

    logits_padded = pl.pallas_call(
        _bert_fused_kernel,
        out_shape=jax.ShapeDtypeStruct((B, HPAD), jnp.float32),
        grid=(1,),
        in_specs=[_full_spec(a.shape) for a in args],
        out_specs=_full_spec((B, HPAD)),
        compiler_params=pltpu.CompilerParams(dimension_semantics=("arbitrary",)),
    )(*args)

    return logits_padded[:, :N_CLASS]


if __name__ == "__main__":
    key = jax.random.PRNGKey(0)
    pkey, ikey = jax.random.split(key)
    params = init_params(pkey)
    packed = pack_params(params)   # one-time weight fusion / padding (outside the jit)

    input_ids = jax.random.randint(ikey, (BATCH, SEQ), 0, VOCAB, dtype=jnp.int32)
    attention_mask = jnp.array([[1] * SEQ,
                                [1] * (SEQ - 2) + [0, 0]], dtype=jnp.int32)
    token_type_ids = jnp.zeros((BATCH, SEQ), dtype=jnp.int32)

    logits = bert_classify_forward(packed, input_ids, attention_mask, token_type_ids)
    logits = jax.block_until_ready(logits)
    assert logits.shape == (BATCH, N_CLASS)
    assert bool(jnp.all(jnp.isfinite(logits)))
    print("KERNEL_OK")
</pallas_src>

<mosaic_0001>
module attributes {stable_mosaic.version = 11 : i64} {
  func.func @_bert_fused_kernel(%arg0: i32, %arg1: memref<16x32xf32, #tpu.memory_space<vmem>>, %arg2: memref<32x32xf32, #tpu.memory_space<vmem>>, %arg3: memref<2x32x768xf32, #tpu.memory_space<vmem>>, %arg4: memref<2x256x32xf32, #tpu.memory_space<vmem>>, %arg5: memref<2x32x64xf32, #tpu.memory_space<vmem>>, %arg6: memref<2x64x32xf32, #tpu.memory_space<vmem>>, %arg7: memref<16x32xf32, #tpu.memory_space<vmem>>, %arg8: memref<8x768xf32, #tpu.memory_space<vmem>>, %arg9: memref<32x256xf32, #tpu.memory_space<vmem>>, %arg10: memref<2x128xf32, #tpu.memory_space<vmem>>) attributes {dimension_semantics = [#tpu.dimension_semantics<arbitrary>], iteration_bounds = array<i64: 1>, scalar_prefetch = 0 : i64, scratch_operands = 0 : i64, tpu.core_type = #tpu.core_type<tc>, window_params = [{pipeline_mode = #tpu.pipeline_mode<synchronous>, transform_indices = @transform_0, window_bounds = array<i64: 16, 32>}, {pipeline_mode = #tpu.pipeline_mode<synchronous>, transform_indices = @transform_1, window_bounds = array<i64: 32, 32>}, {pipeline_mode = #tpu.pipeline_mode<synchronous>, transform_indices = @transform_2, window_bounds = array<i64: 2, 32, 768>}, {pipeline_mode = #tpu.pipeline_mode<synchronous>, transform_indices = @transform_3, window_bounds = array<i64: 2, 256, 32>}, {pipeline_mode = #tpu.pipeline_mode<synchronous>, transform_indices = @transform_4, window_bounds = array<i64: 2, 32, 64>}, {pipeline_mode = #tpu.pipeline_mode<synchronous>, transform_indices = @transform_5, window_bounds = array<i64: 2, 64, 32>}, {pipeline_mode = #tpu.pipeline_mode<synchronous>, transform_indices = @transform_6, window_bounds = array<i64: 16, 32>}, {pipeline_mode = #tpu.pipeline_mode<synchronous>, transform_indices = @transform_7, window_bounds = array<i64: 8, 768>}, {pipeline_mode = #tpu.pipeline_mode<synchronous>, transform_indices = @transform_8, window_bounds = array<i64: 32, 256>}, {pipeline_mode = #tpu.pipeline_mode<synchronous>, transform_indices = @transform_9, window_bounds = array<i64: 2, 128>}]} {
    %c0 = arith.constant 0 : index
    %c0_0 = arith.constant 0 : index
    %0 = vector.load %arg2[%c0, %c0_0] : memref<32x32xf32, #tpu.memory_space<vmem>>, vector<32x32xf32>
    %c0_1 = arith.constant 0 : index
    %c0_2 = arith.constant 0 : index
    %1 = vector.load %arg1[%c0_1, %c0_2] : memref<16x32xf32, #tpu.memory_space<vmem>>, vector<16x32xf32>
    %c0_3 = arith.constant 0 : index
    %c0_4 = arith.constant 0 : index
    %2 = vector.load %arg7[%c0_3, %c0_4] : memref<16x32xf32, #tpu.memory_space<vmem>>, vector<1x32xf32>
    %c1 = arith.constant 1 : index
    %c0_5 = arith.constant 0 : index
    %3 = vector.load %arg7[%c1, %c0_5] : memref<16x32xf32, #tpu.memory_space<vmem>>, vector<1x32xf32>
    %cst = arith.constant dense<0.000000e+00> : vector<16xf32>
    %4 = vector.multi_reduction <add>, %1, %cst [1] : vector<16x32xf32> to vector<16xf32>
    %5 = vector.shape_cast %4 : vector<16xf32> to vector<16x1xf32>
    %cst_6 = arith.constant 3.200000e+01 : f32
    %6 = vector.broadcast %cst_6 : f32 to vector<16x1xf32>
    %7 = arith.divf %5, %6 : vector<16x1xf32>
    %8 = vector.broadcast %7 : vector<16x1xf32> to vector<16x32xf32>
    %9 = arith.subf %1, %8 : vector<16x32xf32>
    %10 = vector.broadcast %7 : vector<16x1xf32> to vector<16x32xf32>
    %11 = arith.subf %1, %10 : vector<16x32xf32>
    %12 = arith.mulf %9, %11 : vector<16x32xf32>
    %cst_7 = arith.constant dense<0.000000e+00> : vector<16xf32>
    %13 = vector.multi_reduction <add>, %12, %cst_7 [1] : vector<16x32xf32> to vector<16xf32>
    %14 = vector.shape_cast %13 : vector<16xf32> to vector<16x1xf32>
    %cst_8 = arith.constant 3.200000e+01 : f32
    %15 = vector.broadcast %cst_8 : f32 to vector<16x1xf32>
    %16 = arith.divf %14, %15 : vector<16x1xf32>
    %17 = vector.broadcast %7 : vector<16x1xf32> to vector<16x32xf32>
    %18 = arith.subf %1, %17 : vector<16x32xf32>
    %cst_9 = arith.constant 9.99999996E-13 : f32
    %19 = vector.broadcast %cst_9 : f32 to vector<16x1xf32>
    %20 = arith.addf %16, %19 : vector<16x1xf32>
    %21 = math.rsqrt %20 : vector<16x1xf32>
    %22 = vector.broadcast %21 : vector<16x1xf32> to vector<16x32xf32>
    %23 = arith.mulf %18, %22 : vector<16x32xf32>
    %24 = vector.broadcast %2 : vector<1x32xf32> to vector<16x32xf32>
    %25 = arith.mulf %23, %24 : vector<16x32xf32>
    %26 = vector.broadcast %3 : vector<1x32xf32> to vector<16x32xf32>
    %27 = arith.addf %25, %26 : vector<16x32xf32>
    %c0_10 = arith.constant 0 : index
    %c0_11 = arith.constant 0 : index
    %c0_12 = arith.constant 0 : index
    %28 = vector.load %arg3[%c0_10, %c0_11, %c0_12] : memref<2x32x768xf32, #tpu.memory_space<vmem>>, vector<1x32x768xf32>
    %29 = vector.shape_cast %28 : vector<1x32x768xf32> to vector<32x768xf32>
    %cst_13 = arith.constant dense<0.000000e+00> : vector<16x768xf32>
    %30 = tpu.matmul %27, %29, %cst_13 {dimension_numbers = #tpu.dot_dimension_numbers<[1], [0], [0], [1], [0, 0, 1, 1], [], []>} : vector<16x32xf32>, vector<32x768xf32>, vector<16x768xf32> -> vector<16x768xf32>
    %c0_14 = arith.constant 0 : index
    %c0_15 = arith.constant 0 : index
    %31 = vector.load %arg8[%c0_14, %c0_15] : memref<8x768xf32, #tpu.memory_space<vmem>>, vector<1x768xf32>
    %32 = vector.broadcast %31 : vector<1x768xf32> to vector<16x768xf32>
    %33 = arith.addf %30, %32 : vector<16x768xf32>
    %34 = vector.extract_strided_slice %33 {offsets = [0, 0], sizes = [16, 128], strides = [1, 1]} : vector<16x768xf32> to vector<16x128xf32>
    %35 = vector.extract_strided_slice %33 {offsets = [0, 128], sizes = [16, 128], strides = [1, 1]} : vector<16x768xf32> to vector<16x128xf32>
    %36 = tpu.concatenate %34, %35 in 0 : vector<16x128xf32>, vector<16x128xf32> -> vector<32x128xf32>
    %37 = vector.extract_strided_slice %33 {offsets = [0, 256], sizes = [16, 128], strides = [1, 1]} : vector<16x768xf32> to vector<16x128xf32>
    %38 = vector.extract_strided_slice %33 {offsets = [0, 384], sizes = [16, 128], strides = [1, 1]} : vector<16x768xf32> to vector<16x128xf32>
    %39 = tpu.concatenate %37, %38 in 0 : vector<16x128xf32>, vector<16x128xf32> -> vector<32x128xf32>
    %40 = vector.extract_strided_slice %33 {offsets = [0, 512], sizes = [16, 128], strides = [1, 1]} : vector<16x768xf32> to vector<16x128xf32>
    %41 = vector.extract_strided_slice %33 {offsets = [0, 640], sizes = [16, 128], strides = [1, 1]} : vector<16x768xf32> to vector<16x128xf32>
    %42 = tpu.concatenate %40, %41 in 0 : vector<16x128xf32>, vector<16x128xf32> -> vector<32x128xf32>
    %cst_16 = arith.constant dense<0.000000e+00> : vector<32x32xf32>
    %43 = tpu.matmul %36, %39, %cst_16 {dimension_numbers = #tpu.dot_dimension_numbers<[1], [1], [0], [0], [0, 0, 1, 0], [], []>} : vector<32x128xf32>, vector<32x128xf32>, vector<32x32xf32> -> vector<32x32xf32>
    %cst_17 = arith.constant 2.500000e-01 : f32
    %44 = vector.broadcast %cst_17 : f32 to vector<32x32xf32>
    %45 = arith.mulf %43, %44 : vector<32x32xf32>
    %46 = arith.addf %45, %0 : vector<32x32xf32>
    %cst_18 = arith.constant dense<0xFF800000> : vector<32xf32>
    %47 = vector.multi_reduction <maximumf>, %46, %cst_18 [1] : vector<32x32xf32> to vector<32xf32>
    %48 = vector.shape_cast %47 : vector<32xf32> to vector<32x1xf32>
    %49 = vector.broadcast %48 : vector<32x1xf32> to vector<32x32xf32>
    %50 = arith.subf %46, %49 : vector<32x32xf32>
    %51 = math.exp %50 : vector<32x32xf32>
    %cst_19 = arith.constant dense<0.000000e+00> : vector<32xf32>
    %52 = vector.multi_reduction <add>, %51, %cst_19 [1] : vector<32x32xf32> to vector<32xf32>
    %53 = vector.shape_cast %52 : vector<32xf32> to vector<32x1xf32>
    %54 = tpu.reciprocal %53 : vector<32x1xf32> -> vector<32x1xf32>
    %55 = vector.broadcast %54 : vector<32x1xf32> to vector<32x32xf32>
    %56 = arith.mulf %51, %55 : vector<32x32xf32>
    %cst_20 = arith.constant dense<0.000000e+00> : vector<32x128xf32>
    %57 = tpu.matmul %56, %42, %cst_20 {dimension_numbers = #tpu.dot_dimension_numbers<[1], [0], [0], [1], [0, 0, 1, 1], [], []>} : vector<32x32xf32>, vector<32x128xf32>, vector<32x128xf32> -> vector<32x128xf32>
    %58 = vector.extract_strided_slice %57 {offsets = [0, 0], sizes = [16, 128], strides = [1, 1]} : vector<32x128xf32> to vector<16x128xf32>
    %59 = vector.extract_strided_slice %57 {offsets = [16, 0], sizes = [16, 128], strides = [1, 1]} : vector<32x128xf32> to vector<16x128xf32>
    %60 = tpu.concatenate %58, %59 in 1 : vector<16x128xf32>, vector<16x128xf32> -> vector<16x256xf32>
    %c0_21 = arith.constant 0 : index
    %c0_22 = arith.constant 0 : index
    %c0_23 = arith.constant 0 : index
    %61 = vector.load %arg4[%c0_21, %c0_22, %c0_23] : memref<2x256x32xf32, #tpu.memory_space<vmem>>, vector<1x256x32xf32>
    %62 = vector.shape_cast %61 : vector<1x256x32xf32> to vector<256x32xf32>
    %cst_24 = arith.constant dense<0.000000e+00> : vector<16x32xf32>
    %63 = tpu.matmul %60, %62, %cst_24 {dimension_numbers = #tpu.dot_dimension_numbers<[1], [0], [0], [1], [0, 0, 1, 1], [], []>} : vector<16x256xf32>, vector<256x32xf32>, vector<16x32xf32> -> vector<16x32xf32>
    %c2 = arith.constant 2 : index
    %c0_25 = arith.constant 0 : index
    %64 = vector.load %arg7[%c2, %c0_25] : memref<16x32xf32, #tpu.memory_space<vmem>>, vector<1x32xf32>
    %65 = vector.broadcast %64 : vector<1x32xf32> to vector<16x32xf32>
    %66 = arith.addf %63, %65 : vector<16x32xf32>
    %67 = arith.addf %66, %27 : vector<16x32xf32>
    %c3 = arith.constant 3 : index
    %c0_26 = arith.constant 0 : index
    %68 = vector.load %arg7[%c3, %c0_26] : memref<16x32xf32, #tpu.memory_space<vmem>>, vector<1x32xf32>
    %c4 = arith.constant 4 : index
    %c0_27 = arith.constant 0 : index
    %69 = vector.load %arg7[%c4, %c0_27] : memref<16x32xf32, #tpu.memory_space<vmem>>, vector<1x32xf32>
    %cst_28 = arith.constant dense<0.000000e+00> : vector<16xf32>
    %70 = vector.multi_reduction <add>, %67, %cst_28 [1] : vector<16x32xf32> to vector<16xf32>
    %71 = vector.shape_cast %70 : vector<16xf32> to vector<16x1xf32>
    %cst_29 = arith.constant 3.200000e+01 : f32
    %72 = vector.broadcast %cst_29 : f32 to vector<16x1xf32>
    %73 = arith.divf %71, %72 : vector<16x1xf32>
    %74 = vector.broadcast %73 : vector<16x1xf32> to vector<16x32xf32>
    %75 = arith.subf %67, %74 : vector<16x32xf32>
    %76 = vector.broadcast %73 : vector<16x1xf32> to vector<16x32xf32>
    %77 = arith.subf %67, %76 : vector<16x32xf32>
    %78 = arith.mulf %75, %77 : vector<16x32xf32>
    %cst_30 = arith.constant dense<0.000000e+00> : vector<16xf32>
    %79 = vector.multi_reduction <add>, %78, %cst_30 [1] : vector<16x32xf32> to vector<16xf32>
    %80 = vector.shape_cast %79 : vector<16xf32> to vector<16x1xf32>
    %cst_31 = arith.constant 3.200000e+01 : f32
    %81 = vector.broadcast %cst_31 : f32 to vector<16x1xf32>
    %82 = arith.divf %80, %81 : vector<16x1xf32>
    %83 = vector.broadcast %73 : vector<16x1xf32> to vector<16x32xf32>
    %84 = arith.subf %67, %83 : vector<16x32xf32>
    %cst_32 = arith.constant 9.99999996E-13 : f32
    %85 = vector.broadcast %cst_32 : f32 to vector<16x1xf32>
    %86 = arith.addf %82, %85 : vector<16x1xf32>
    %87 = math.rsqrt %86 : vector<16x1xf32>
    %88 = vector.broadcast %87 : vector<16x1xf32> to vector<16x32xf32>
    %89 = arith.mulf %84, %88 : vector<16x32xf32>
    %90 = vector.broadcast %68 : vector<1x32xf32> to vector<16x32xf32>
    %91 = arith.mulf %89, %90 : vector<16x32xf32>
    %92 = vector.broadcast %69 : vector<1x32xf32> to vector<16x32xf32>
    %93 = arith.addf %91, %92 : vector<16x32xf32>
    %c0_33 = arith.constant 0 : index
    %c0_34 = arith.constant 0 : index
    %c0_35 = arith.constant 0 : index
    %94 = vector.load %arg5[%c0_33, %c0_34, %c0_35] : memref<2x32x64xf32, #tpu.memory_space<vmem>>, vector<1x32x64xf32>
    %95 = vector.shape_cast %94 : vector<1x32x64xf32> to vector<32x64xf32>
    %cst_36 = arith.constant dense<0.000000e+00> : vector<16x64xf32>
    %96 = tpu.matmul %93, %95, %cst_36 {dimension_numbers = #tpu.dot_dimension_numbers<[1], [0], [0], [1], [0, 0, 1, 1], [], []>} : vector<16x32xf32>, vector<32x64xf32>, vector<16x64xf32> -> vector<16x64xf32>
    %c2_37 = arith.constant 2 : index
    %c0_38 = arith.constant 0 : index
    %97 = vector.load %arg8[%c2_37, %c0_38] : memref<8x768xf32, #tpu.memory_space<vmem>>, vector<1x64xf32>
    %98 = vector.broadcast %97 : vector<1x64xf32> to vector<16x64xf32>
    %99 = arith.addf %96, %98 : vector<16x64xf32>
    %cst_39 = arith.constant 5.000000e-01 : f32
    %100 = vector.broadcast %cst_39 : f32 to vector<16x64xf32>
    %101 = arith.mulf %100, %99 : vector<16x64xf32>
    %cst_40 = arith.constant 0.707106769 : f32
    %102 = vector.broadcast %cst_40 : f32 to vector<16x64xf32>
    %103 = arith.mulf %99, %102 : vector<16x64xf32>
    %104 = math.erf %103 : vector<16x64xf32>
    %cst_41 = arith.constant 1.000000e+00 : f32
    %105 = vector.broadcast %cst_41 : f32 to vector<16x64xf32>
    %106 = arith.addf %105, %104 : vector<16x64xf32>
    %107 = arith.mulf %101, %106 : vector<16x64xf32>
    %c0_42 = arith.constant 0 : index
    %c0_43 = arith.constant 0 : index
    %c0_44 = arith.constant 0 : index
    %108 = vector.load %arg6[%c0_42, %c0_43, %c0_44] : memref<2x64x32xf32, #tpu.memory_space<vmem>>, vector<1x64x32xf32>
    %109 = vector.shape_cast %108 : vector<1x64x32xf32> to vector<64x32xf32>
    %cst_45 = arith.constant dense<0.000000e+00> : vector<16x32xf32>
    %110 = tpu.matmul %107, %109, %cst_45 {dimension_numbers = #tpu.dot_dimension_numbers<[1], [0], [0], [1], [0, 0, 1, 1], [], []>} : vector<16x64xf32>, vector<64x32xf32>, vector<16x32xf32> -> vector<16x32xf32>
    %c5 = arith.constant 5 : index
    %c0_46 = arith.constant 0 : index
    %111 = vector.load %arg7[%c5, %c0_46] : memref<16x32xf32, #tpu.memory_space<vmem>>, vector<1x32xf32>
    %112 = vector.broadcast %111 : vector<1x32xf32> to vector<16x32xf32>
    %113 = arith.addf %110, %112 : vector<16x32xf32>
    %114 = arith.addf %113, %93 : vector<16x32xf32>
    %c6 = arith.constant 6 : index
    %c0_47 = arith.constant 0 : index
    %115 = vector.load %arg7[%c6, %c0_47] : memref<16x32xf32, #tpu.memory_space<vmem>>, vector<1x32xf32>
    %c7 = arith.constant 7 : index
    %c0_48 = arith.constant 0 : index
    %116 = vector.load %arg7[%c7, %c0_48] : memref<16x32xf32, #tpu.memory_space<vmem>>, vector<1x32xf32>
    %cst_49 = arith.constant dense<0.000000e+00> : vector<16xf32>
    %117 = vector.multi_reduction <add>, %114, %cst_49 [1] : vector<16x32xf32> to vector<16xf32>
    %118 = vector.shape_cast %117 : vector<16xf32> to vector<16x1xf32>
    %cst_50 = arith.constant 3.200000e+01 : f32
    %119 = vector.broadcast %cst_50 : f32 to vector<16x1xf32>
    %120 = arith.divf %118, %119 : vector<16x1xf32>
    %121 = vector.broadcast %120 : vector<16x1xf32> to vector<16x32xf32>
    %122 = arith.subf %114, %121 : vector<16x32xf32>
    %123 = vector.broadcast %120 : vector<16x1xf32> to vector<16x32xf32>
    %124 = arith.subf %114, %123 : vector<16x32xf32>
    %125 = arith.mulf %122, %124 : vector<16x32xf32>
    %cst_51 = arith.constant dense<0.000000e+00> : vector<16xf32>
    %126 = vector.multi_reduction <add>, %125, %cst_51 [1] : vector<16x32xf32> to vector<16xf32>
    %127 = vector.shape_cast %126 : vector<16xf32> to vector<16x1xf32>
    %cst_52 = arith.constant 3.200000e+01 : f32
    %128 = vector.broadcast %cst_52 : f32 to vector<16x1xf32>
    %129 = arith.divf %127, %128 : vector<16x1xf32>
    %130 = vector.broadcast %120 : vector<16x1xf32> to vector<16x32xf32>
    %131 = arith.subf %114, %130 : vector<16x32xf32>
    %cst_53 = arith.constant 9.99999996E-13 : f32
    %132 = vector.broadcast %cst_53 : f32 to vector<16x1xf32>
    %133 = arith.addf %129, %132 : vector<16x1xf32>
    %134 = math.rsqrt %133 : vector<16x1xf32>
    %135 = vector.broadcast %134 : vector<16x1xf32> to vector<16x32xf32>
    %136 = arith.mulf %131, %135 : vector<16x32xf32>
    %137 = vector.broadcast %115 : vector<1x32xf32> to vector<16x32xf32>
    %138 = arith.mulf %136, %137 : vector<16x32xf32>
    %139 = vector.broadcast %116 : vector<1x32xf32> to vector<16x32xf32>
    %140 = arith.addf %138, %139 : vector<16x32xf32>
    %c1_54 = arith.constant 1 : index
    %c0_55 = arith.constant 0 : index
    %c0_56 = arith.constant 0 : index
    %141 = vector.load %arg3[%c1_54, %c0_55, %c0_56] : memref<2x32x768xf32, #tpu.memory_space<vmem>>, vector<1x32x768xf32>
    %142 = vector.shape_cast %141 : vector<1x32x768xf32> to vector<32x768xf32>
    %cst_57 = arith.constant dense<0.000000e+00> : vector<16x768xf32>
    %143 = tpu.matmul %140, %142, %cst_57 {dimension_numbers = #tpu.dot_dimension_numbers<[1], [0], [0], [1], [0, 0, 1, 1], [], []>} : vector<16x32xf32>, vector<32x768xf32>, vector<16x768xf32> -> vector<16x768xf32>
    %c1_58 = arith.constant 1 : index
    %c0_59 = arith.constant 0 : index
    %144 = vector.load %arg8[%c1_58, %c0_59] : memref<8x768xf32, #tpu.memory_space<vmem>>, vector<1x768xf32>
    %145 = vector.broadcast %144 : vector<1x768xf32> to vector<16x768xf32>
    %146 = arith.addf %143, %145 : vector<16x768xf32>
    %147 = vector.extract_strided_slice %146 {offsets = [0, 0], sizes = [16, 128], strides = [1, 1]} : vector<16x768xf32> to vector<16x128xf32>
    %148 = vector.extract_strided_slice %146 {offsets = [0, 128], sizes = [16, 128], strides = [1, 1]} : vector<16x768xf32> to vector<16x128xf32>
    %149 = tpu.concatenate %147, %148 in 0 : vector<16x128xf32>, vector<16x128xf32> -> vector<32x128xf32>
    %150 = vector.extract_strided_slice %146 {offsets = [0, 256], sizes = [16, 128], strides = [1, 1]} : vector<16x768xf32> to vector<16x128xf32>
    %151 = vector.extract_strided_slice %146 {offsets = [0, 384], sizes = [16, 128], strides = [1, 1]} : vector<16x768xf32> to vector<16x128xf32>
    %152 = tpu.concatenate %150, %151 in 0 : vector<16x128xf32>, vector<16x128xf32> -> vector<32x128xf32>
    %153 = vector.extract_strided_slice %146 {offsets = [0, 512], sizes = [16, 128], strides = [1, 1]} : vector<16x768xf32> to vector<16x128xf32>
    %154 = vector.extract_strided_slice %146 {offsets = [0, 640], sizes = [16, 128], strides = [1, 1]} : vector<16x768xf32> to vector<16x128xf32>
    %155 = tpu.concatenate %153, %154 in 0 : vector<16x128xf32>, vector<16x128xf32> -> vector<32x128xf32>
    %cst_60 = arith.constant dense<0.000000e+00> : vector<32x32xf32>
    %156 = tpu.matmul %149, %152, %cst_60 {dimension_numbers = #tpu.dot_dimension_numbers<[1], [1], [0], [0], [0, 0, 1, 0], [], []>} : vector<32x128xf32>, vector<32x128xf32>, vector<32x32xf32> -> vector<32x32xf32>
    %cst_61 = arith.constant 2.500000e-01 : f32
    %157 = vector.broadcast %cst_61 : f32 to vector<32x32xf32>
    %158 = arith.mulf %156, %157 : vector<32x32xf32>
    %159 = arith.addf %158, %0 : vector<32x32xf32>
    %cst_62 = arith.constant dense<0xFF800000> : vector<32xf32>
    %160 = vector.multi_reduction <maximumf>, %159, %cst_62 [1] : vector<32x32xf32> to vector<32xf32>
    %161 = vector.shape_cast %160 : vector<32xf32> to vector<32x1xf32>
    %162 = vector.broadcast %161 : vector<32x1xf32> to vector<32x32xf32>
    %163 = arith.subf %159, %162 : vector<32x32xf32>
    %164 = math.exp %163 : vector<32x32xf32>
    %cst_63 = arith.constant dense<0.000000e+00> : vector<32xf32>
    %165 = vector.multi_reduction <add>, %164, %cst_63 [1] : vector<32x32xf32> to vector<32xf32>
    %166 = vector.shape_cast %165 : vector<32xf32> to vector<32x1xf32>
    %167 = tpu.reciprocal %166 : vector<32x1xf32> -> vector<32x1xf32>
    %168 = vector.broadcast %167 : vector<32x1xf32> to vector<32x32xf32>
    %169 = arith.mulf %164, %168 : vector<32x32xf32>
    %cst_64 = arith.constant dense<0.000000e+00> : vector<32x128xf32>
    %170 = tpu.matmul %169, %155, %cst_64 {dimension_numbers = #tpu.dot_dimension_numbers<[1], [0], [0], [1], [0, 0, 1, 1], [], []>} : vector<32x32xf32>, vector<32x128xf32>, vector<32x128xf32> -> vector<32x128xf32>
    %171 = vector.extract_strided_slice %170 {offsets = [0, 0], sizes = [16, 128], strides = [1, 1]} : vector<32x128xf32> to vector<16x128xf32>
    %172 = vector.extract_strided_slice %170 {offsets = [16, 0], sizes = [16, 128], strides = [1, 1]} : vector<32x128xf32> to vector<16x128xf32>
    %173 = tpu.concatenate %171, %172 in 1 : vector<16x128xf32>, vector<16x128xf32> -> vector<16x256xf32>
    %c1_65 = arith.constant 1 : index
    %c0_66 = arith.constant 0 : index
    %c0_67 = arith.constant 0 : index
    %174 = vector.load %arg4[%c1_65, %c0_66, %c0_67] : memref<2x256x32xf32, #tpu.memory_space<vmem>>, vector<1x256x32xf32>
    %175 = vector.shape_cast %174 : vector<1x256x32xf32> to vector<256x32xf32>
    %cst_68 = arith.constant dense<0.000000e+00> : vector<16x32xf32>
    %176 = tpu.matmul %173, %175, %cst_68 {dimension_numbers = #tpu.dot_dimension_numbers<[1], [0], [0], [1], [0, 0, 1, 1], [], []>} : vector<16x256xf32>, vector<256x32xf32>, vector<16x32xf32> -> vector<16x32xf32>
    %c8 = arith.constant 8 : index
    %c0_69 = arith.constant 0 : index
    %177 = vector.load %arg7[%c8, %c0_69] : memref<16x32xf32, #tpu.memory_space<vmem>>, vector<1x32xf32>
    %178 = vector.broadcast %177 : vector<1x32xf32> to vector<16x32xf32>
    %179 = arith.addf %176, %178 : vector<16x32xf32>
    %180 = arith.addf %179, %140 : vector<16x32xf32>
    %c9 = arith.constant 9 : index
    %c0_70 = arith.constant 0 : index
    %181 = vector.load %arg7[%c9, %c0_70] : memref<16x32xf32, #tpu.memory_space<vmem>>, vector<1x32xf32>
    %c10 = arith.constant 10 : index
    %c0_71 = arith.constant 0 : index
    %182 = vector.load %arg7[%c10, %c0_71] : memref<16x32xf32, #tpu.memory_space<vmem>>, vector<1x32xf32>
    %cst_72 = arith.constant dense<0.000000e+00> : vector<16xf32>
    %183 = vector.multi_reduction <add>, %180, %cst_72 [1] : vector<16x32xf32> to vector<16xf32>
    %184 = vector.shape_cast %183 : vector<16xf32> to vector<16x1xf32>
    %cst_73 = arith.constant 3.200000e+01 : f32
    %185 = vector.broadcast %cst_73 : f32 to vector<16x1xf32>
    %186 = arith.divf %184, %185 : vector<16x1xf32>
    %187 = vector.broadcast %186 : vector<16x1xf32> to vector<16x32xf32>
    %188 = arith.subf %180, %187 : vector<16x32xf32>
    %189 = vector.broadcast %186 : vector<16x1xf32> to vector<16x32xf32>
    %190 = arith.subf %180, %189 : vector<16x32xf32>
    %191 = arith.mulf %188, %190 : vector<16x32xf32>
    %cst_74 = arith.constant dense<0.000000e+00> : vector<16xf32>
    %192 = vector.multi_reduction <add>, %191, %cst_74 [1] : vector<16x32xf32> to vector<16xf32>
    %193 = vector.shape_cast %192 : vector<16xf32> to vector<16x1xf32>
    %cst_75 = arith.constant 3.200000e+01 : f32
    %194 = vector.broadcast %cst_75 : f32 to vector<16x1xf32>
    %195 = arith.divf %193, %194 : vector<16x1xf32>
    %196 = vector.broadcast %186 : vector<16x1xf32> to vector<16x32xf32>
    %197 = arith.subf %180, %196 : vector<16x32xf32>
    %cst_76 = arith.constant 9.99999996E-13 : f32
    %198 = vector.broadcast %cst_76 : f32 to vector<16x1xf32>
    %199 = arith.addf %195, %198 : vector<16x1xf32>
    %200 = math.rsqrt %199 : vector<16x1xf32>
    %201 = vector.broadcast %200 : vector<16x1xf32> to vector<16x32xf32>
    %202 = arith.mulf %197, %201 : vector<16x32xf32>
    %203 = vector.broadcast %181 : vector<1x32xf32> to vector<16x32xf32>
    %204 = arith.mulf %202, %203 : vector<16x32xf32>
    %205 = vector.broadcast %182 : vector<1x32xf32> to vector<16x32xf32>
    %206 = arith.addf %204, %205 : vector<16x32xf32>
    %c1_77 = arith.constant 1 : index
    %c0_78 = arith.constant 0 : index
    %c0_79 = arith.constant 0 : index
    %207 = vector.load %arg5[%c1_77, %c0_78, %c0_79] : memref<2x32x64xf32, #tpu.memory_space<vmem>>, vector<1x32x64xf32>
    %208 = vector.shape_cast %207 : vector<1x32x64xf32> to vector<32x64xf32>
    %cst_80 = arith.constant dense<0.000000e+00> : vector<16x64xf32>
    %209 = tpu.matmul %206, %208, %cst_80 {dimension_numbers = #tpu.dot_dimension_numbers<[1], [0], [0], [1], [0, 0, 1, 1], [], []>} : vector<16x32xf32>, vector<32x64xf32>, vector<16x64xf32> -> vector<16x64xf32>
    %c3_81 = arith.constant 3 : index
    %c0_82 = arith.constant 0 : index
    %210 = vector.load %arg8[%c3_81, %c0_82] : memref<8x768xf32, #tpu.memory_space<vmem>>, vector<1x64xf32>
    %211 = vector.broadcast %210 : vector<1x64xf32> to vector<16x64xf32>
    %212 = arith.addf %209, %211 : vector<16x64xf32>
    %cst_83 = arith.constant 5.000000e-01 : f32
    %213 = vector.broadcast %cst_83 : f32 to vector<16x64xf32>
    %214 = arith.mulf %213, %212 : vector<16x64xf32>
    %cst_84 = arith.constant 0.707106769 : f32
    %215 = vector.broadcast %cst_84 : f32 to vector<16x64xf32>
    %216 = arith.mulf %212, %215 : vector<16x64xf32>
    %217 = math.erf %216 : vector<16x64xf32>
    %cst_85 = arith.constant 1.000000e+00 : f32
    %218 = vector.broadcast %cst_85 : f32 to vector<16x64xf32>
    %219 = arith.addf %218, %217 : vector<16x64xf32>
    %220 = arith.mulf %214, %219 : vector<16x64xf32>
    %c1_86 = arith.constant 1 : index
    %c0_87 = arith.constant 0 : index
    %c0_88 = arith.constant 0 : index
    %221 = vector.load %arg6[%c1_86, %c0_87, %c0_88] : memref<2x64x32xf32, #tpu.memory_space<vmem>>, vector<1x64x32xf32>
    %222 = vector.shape_cast %221 : vector<1x64x32xf32> to vector<64x32xf32>
    %cst_89 = arith.constant dense<0.000000e+00> : vector<16x32xf32>
    %223 = tpu.matmul %220, %222, %cst_89 {dimension_numbers = #tpu.dot_dimension_numbers<[1], [0], [0], [1], [0, 0, 1, 1], [], []>} : vector<16x64xf32>, vector<64x32xf32>, vector<16x32xf32> -> vector<16x32xf32>
    %c11 = arith.constant 11 : index
    %c0_90 = arith.constant 0 : index
    %224 = vector.load %arg7[%c11, %c0_90] : memref<16x32xf32, #tpu.memory_space<vmem>>, vector<1x32xf32>
    %225 = vector.broadcast %224 : vector<1x32xf32> to vector<16x32xf32>
    %226 = arith.addf %223, %225 : vector<16x32xf32>
    %227 = arith.addf %226, %206 : vector<16x32xf32>
    %c12 = arith.constant 12 : index
    %c0_91 = arith.constant 0 : index
    %228 = vector.load %arg7[%c12, %c0_91] : memref<16x32xf32, #tpu.memory_space<vmem>>, vector<1x32xf32>
    %c13 = arith.constant 13 : index
    %c0_92 = arith.constant 0 : index
    %229 = vector.load %arg7[%c13, %c0_92] : memref<16x32xf32, #tpu.memory_space<vmem>>, vector<1x32xf32>
    %cst_93 = arith.constant dense<0.000000e+00> : vector<16xf32>
    %230 = vector.multi_reduction <add>, %227, %cst_93 [1] : vector<16x32xf32> to vector<16xf32>
    %231 = vector.shape_cast %230 : vector<16xf32> to vector<16x1xf32>
    %cst_94 = arith.constant 3.200000e+01 : f32
    %232 = vector.broadcast %cst_94 : f32 to vector<16x1xf32>
    %233 = arith.divf %231, %232 : vector<16x1xf32>
    %234 = vector.broadcast %233 : vector<16x1xf32> to vector<16x32xf32>
    %235 = arith.subf %227, %234 : vector<16x32xf32>
    %236 = vector.broadcast %233 : vector<16x1xf32> to vector<16x32xf32>
    %237 = arith.subf %227, %236 : vector<16x32xf32>
    %238 = arith.mulf %235, %237 : vector<16x32xf32>
    %cst_95 = arith.constant dense<0.000000e+00> : vector<16xf32>
    %239 = vector.multi_reduction <add>, %238, %cst_95 [1] : vector<16x32xf32> to vector<16xf32>
    %240 = vector.shape_cast %239 : vector<16xf32> to vector<16x1xf32>
    %cst_96 = arith.constant 3.200000e+01 : f32
    %241 = vector.broadcast %cst_96 : f32 to vector<16x1xf32>
    %242 = arith.divf %240, %241 : vector<16x1xf32>
    %243 = vector.broadcast %233 : vector<16x1xf32> to vector<16x32xf32>
    %244 = arith.subf %227, %243 : vector<16x32xf32>
    %cst_97 = arith.constant 9.99999996E-13 : f32
    %245 = vector.broadcast %cst_97 : f32 to vector<16x1xf32>
    %246 = arith.addf %242, %245 : vector<16x1xf32>
    %247 = math.rsqrt %246 : vector<16x1xf32>
    %248 = vector.broadcast %247 : vector<16x1xf32> to vector<16x32xf32>
    %249 = arith.mulf %244, %248 : vector<16x32xf32>
    %250 = vector.broadcast %228 : vector<1x32xf32> to vector<16x32xf32>
    %251 = arith.mulf %249, %250 : vector<16x32xf32>
    %252 = vector.broadcast %229 : vector<1x32xf32> to vector<16x32xf32>
    %253 = arith.addf %251, %252 : vector<16x32xf32>
    %254 = tpu.iota {dimensions = array<i32: 0>} : vector<2x16xi32>
    %255 = tpu.iota {dimensions = array<i32: 1>} : vector<2x16xi32>
    %c8_i32 = arith.constant 8 : i32
    %256 = vector.broadcast %c8_i32 : i32 to vector<2x16xi32>
    %257 = arith.muli %254, %256 : vector<2x16xi32>
    %258 = arith.cmpi eq, %255, %257 : vector<2x16xi32>
    %259 = arith.extui %258 : vector<2x16xi1> to vector<2x16xi32>
    %260 = arith.sitofp %259 : vector<2x16xi32> to vector<2x16xf32>
    %cst_98 = arith.constant dense<0.000000e+00> : vector<2x32xf32>
    %261 = tpu.matmul %260, %253, %cst_98 {dimension_numbers = #tpu.dot_dimension_numbers<[1], [0], [0], [1], [0, 0, 1, 1], [], []>} : vector<2x16xf32>, vector<16x32xf32>, vector<2x32xf32> -> vector<2x32xf32>
    %c0_99 = arith.constant 0 : index
    %c0_100 = arith.constant 0 : index
    %262 = vector.load %arg9[%c0_99, %c0_100] : memref<32x256xf32, #tpu.memory_space<vmem>>, vector<32x32xf32>
    %c0_101 = arith.constant 0 : index
    %c128 = arith.constant 128 : index
    %263 = vector.load %arg9[%c0_101, %c128] : memref<32x256xf32, #tpu.memory_space<vmem>>, vector<32x128xf32>
    %cst_102 = arith.constant dense<0.000000e+00> : vector<2x32xf32>
    %264 = tpu.matmul %261, %262, %cst_102 {dimension_numbers = #tpu.dot_dimension_numbers<[1], [0], [0], [1], [0, 0, 1, 1], [], []>} : vector<2x32xf32>, vector<32x32xf32>, vector<2x32xf32> -> vector<2x32xf32>
    %c14 = arith.constant 14 : index
    %c0_103 = arith.constant 0 : index
    %265 = vector.load %arg7[%c14, %c0_103] : memref<16x32xf32, #tpu.memory_space<vmem>>, vector<1x32xf32>
    %266 = vector.broadcast %265 : vector<1x32xf32> to vector<2x32xf32>
    %267 = arith.addf %264, %266 : vector<2x32xf32>
    %268 = math.tanh %267 : vector<2x32xf32>
    %cst_104 = arith.constant dense<0.000000e+00> : vector<2x128xf32>
    %269 = tpu.matmul %268, %263, %cst_104 {dimension_numbers = #tpu.dot_dimension_numbers<[1], [0], [0], [1], [0, 0, 1, 1], [], []>} : vector<2x32xf32>, vector<32x128xf32>, vector<2x128xf32> -> vector<2x128xf32>
    %c4_105 = arith.constant 4 : index
    %c0_106 = arith.constant 0 : index
    %270 = vector.load %arg8[%c4_105, %c0_106] : memref<8x768xf32, #tpu.memory_space<vmem>>, vector<1x128xf32>
    %271 = vector.broadcast %270 : vector<1x128xf32> to vector<2x128xf32>
    %272 = arith.addf %269, %271 : vector<2x128xf32>
    %c0_107 = arith.constant 0 : index
    %c0_108 = arith.constant 0 : index
    %273 = vector.load %arg10[%c0_107, %c0_108] : memref<2x128xf32, #tpu.memory_space<vmem>>, vector<2x128xf32>
    tpu.vector_store %arg10[%c0_107, %c0_108], %272 {strides = array<i32>} : memref<2x128xf32, #tpu.memory_space<vmem>>, vector<2x128xf32>,
    return
  }
  func.func @transform_0(%arg0: i32) -> (i32, i32) {
    %c0_i32 = arith.constant 0 : i32
    %c0_i32_0 = arith.constant 0 : i32
    %c0_i32_1 = arith.constant 0 : i32
    return %c0_i32, %c0_i32_0 : i32, i32
  }
  func.func @transform_1(%arg0: i32) -> (i32, i32) {
    %c0_i32 = arith.constant 0 : i32
    %c0_i32_0 = arith.constant 0 : i32
    %c0_i32_1 = arith.constant 0 : i32
    return %c0_i32, %c0_i32_0 : i32, i32
  }
  func.func @transform_2(%arg0: i32) -> (i32, i32, i32) {
    %c0_i32 = arith.constant 0 : i32
    %c0_i32_0 = arith.constant 0 : i32
    %c0_i32_1 = arith.constant 0 : i32
    %c0_i32_2 = arith.constant 0 : i32
    return %c0_i32, %c0_i32_0, %c0_i32_1 : i32, i32, i32
  }
  func.func @transform_3(%arg0: i32) -> (i32, i32, i32) {
    %c0_i32 = arith.constant 0 : i32
    %c0_i32_0 = arith.constant 0 : i32
    %c0_i32_1 = arith.constant 0 : i32
    %c0_i32_2 = arith.constant 0 : i32
    return %c0_i32, %c0_i32_0, %c0_i32_1 : i32, i32, i32
  }
  func.func @transform_4(%arg0: i32) -> (i32, i32, i32) {
    %c0_i32 = arith.constant 0 : i32
    %c0_i32_0 = arith.constant 0 : i32
    %c0_i32_1 = arith.constant 0 : i32
    %c0_i32_2 = arith.constant 0 : i32
    return %c0_i32, %c0_i32_0, %c0_i32_1 : i32, i32, i32
  }
  func.func @transform_5(%arg0: i32) -> (i32, i32, i32) {
    %c0_i32 = arith.constant 0 : i32
    %c0_i32_0 = arith.constant 0 : i32
    %c0_i32_1 = arith.constant 0 : i32
    %c0_i32_2 = arith.constant 0 : i32
    return %c0_i32, %c0_i32_0, %c0_i32_1 : i32, i32, i32
  }
  func.func @transform_6(%arg0: i32) -> (i32, i32) {
    %c0_i32 = arith.constant 0 : i32
    %c0_i32_0 = arith.constant 0 : i32
    %c0_i32_1 = arith.constant 0 : i32
    return %c0_i32, %c0_i32_0 : i32, i32
  }
  func.func @transform_7(%arg0: i32) -> (i32, i32) {
    %c0_i32 = arith.constant 0 : i32
    %c0_i32_0 = arith.constant 0 : i32
    %c0_i32_1 = arith.constant 0 : i32
    return %c0_i32, %c0_i32_0 : i32, i32
  }
  func.func @transform_8(%arg0: i32) -> (i32, i32) {
    %c0_i32 = arith.constant 0 : i32
    %c0_i32_0 = arith.constant 0 : i32
    %c0_i32_1 = arith.constant 0 : i32
    return %c0_i32, %c0_i32_0 : i32, i32
  }
  func.func @transform_9(%arg0: i32) -> (i32, i32) {
    %c0_i32 = arith.constant 0 : i32
    %c0_i32_0 = arith.constant 0 : i32
    %c0_i32_1 = arith.constant 0 : i32
    return %c0_i32, %c0_i32_0 : i32, i32
  }
}

</mosaic_0001>

<llo_original>
// kernel: tile.5
$region0: #{tile.5}
  %s0 = inlined_call_operand.vmem [shape: f32[2,8], index: 0, kind: input, shape index: {}]
  %s1 = inlined_call_operand.vmem [shape: f32[16], index: 1, kind: output, shape index: {}]
  $region1: #{tile.5} parent=0
    #allocation0 [shape = 'u8[4096]{0}', space=vmem, size = 0x1000, scoped, tag = 'scoped mem for output reshape']
    #allocation1 [shape = 'u8[4096]{0}', space=vmem, size = 0x1000, scoped, tag = 'scoped mem for input reshape']
    %s3 = sshllo.u32 0, 2
    %v4 = vld [vmem:[%s0] sm:%s3]
    %5 = vst [vmem:[#allocation1] sm:%s3] %v4
    %v6 = vld [vmem:[#allocation1] sm:$0x1]
    %vm7 = vcmask 64512
    %8 = vst.msk [vmem:[#allocation0] sm:$0x1] %vm7, %v6
    %s9 = scalar_lea.vmem [#allocation1], 1
    %v10 = vld [vmem:[%s9] sm:$0x1]
    %11 = vrot.lane.b32.xlu0 %v10, 8
    %v12 = vpop.permute.xlu0 %11
    %vm13 = vcmask 130112
    %14 = vst.msk [vmem:[#allocation0] sm:$0x1] %vm13, %v12
    %s16 = sshllo.u32 0, 1
    %v18 = vld [vmem:[#allocation0] sm:%s16]
    %s19 = sshllo.u32 0, 1
    %20 = vst [vmem:[%s1] sm:%s19] %v18

// kernel: tile.6
$region0: #{tile.6}
  #allocation0 [shape = 's32[1]{0}', space=sflag, size = 0x4, scoped, tag = 'scoped memory for tile.6']
  %s0 = inlined_call_operand.vmem [shape: f32[16], index: 0, kind: input, shape index: {}]
  %s1 = inlined_call_operand.vmem [shape: f32[2,16], index: 1, kind: output, shape index: {}]
  // Predicated region
  $region2: #{tile.6} parent=0 // pred_check
    _
  $region3: #{tile.6} parent=0 // pred_check_branch
    %3 = sbr.rel (0) target = $region5
  $region4: #{tile.6} parent=0 // pred_region
    _
  $region5: #{tile.6} parent=0 // pred_fallthru
    _
  %v4 = vld [vmem:[%s0] ss:$0 sm:$0xff]
  %5 = vst [vmem:[%s1] sm:$0x3] %v4

// kernel: bert_classify_forward.1
$region0: #{bert_classify_forward.1}
  #allocation0 [shape = 'u32[]', space=smem, size = 0x4, offset = 0x4, fixed_abs, tag = 'smem constant byte address 0x4 - core index']
  #allocation1 [shape = 'u32[144,128]{1,0:T(1,128)}', space=vmem, size = 0x12000, scoped, tag = 'internal scratch']
  %s0 = inlined_call_operand.vmem [shape: f32[16,32], index: 0, kind: input, shape index: {}]
  %s1 = inlined_call_operand.vmem [shape: f32[32,32], index: 1, kind: input, shape index: {}]
  %s2 = inlined_call_operand.vmem [shape: f32[2,32,768], index: 2, kind: input, shape index: {}]
  %s3 = inlined_call_operand.vmem [shape: f32[2,256,32], index: 3, kind: input, shape index: {}]
  %s4 = inlined_call_operand.vmem [shape: f32[2,32,64], index: 4, kind: input, shape index: {}]
  %s5 = inlined_call_operand.vmem [shape: f32[2,64,32], index: 5, kind: input, shape index: {}]
  %s6 = inlined_call_operand.vmem [shape: f32[16,32], index: 6, kind: input, shape index: {}]
  %s7 = inlined_call_operand.vmem [shape: f32[8,768], index: 7, kind: input, shape index: {}]
  %s8 = inlined_call_operand.vmem [shape: f32[32,256], index: 8, kind: input, shape index: {}]
  %s9 = inlined_call_operand.hbm [shape: f32[2,128], index: 9, kind: output, shape index: {}]
  %s10 = sld [smem:[#allocation0]]
  $region46: #{bert_classify_forward.1} parent=0
    _
  %s12 = ssub.s32 1, %s10
  %s13 = scalar_select 0, %s12, %s10
  $region1: #{bert_classify_forward.1} parent=0
    #allocation2 [shape = 'u8[1024]{0}', space=vmem, size = 0x400, scoped, tag = 'output window, operand 0, single buffered']
    #allocation3 [shape = 's32[1]{0}', space=sflag, size = 0x4, scoped, tag = 'scoped memory for bert_classify_forward.1']
    %14 = vsyncpa [#allocation3], 0
    // Predicated region
    $region2: #{bert_classify_forward.1} parent=1 // pred_check
      _
    $region3: #{bert_classify_forward.1} parent=1 // pred_check_branch
      %16 = sbr.rel (0) target = $region5
    $region4: #{bert_classify_forward.1} parent=1 // pred_region
      _
    $region5: #{bert_classify_forward.1} parent=1 // pred_fallthru
      _
    // Predicated region
    $region6: #{bert_classify_forward.1} parent=1 // pred_check
      _
    $region7: #{bert_classify_forward.1} parent=1 // pred_check_branch
      %18 = sbr.rel (0) target = $region9
    $region8: #{bert_classify_forward.1} parent=1 // pred_region
      _
    $region9: #{bert_classify_forward.1} parent=1 // pred_fallthru
      _
    // Predicated region
    $region10: #{bert_classify_forward.1} parent=1 // pred_check
      _
    $region11: #{bert_classify_forward.1} parent=1 // pred_check_branch
      %20 = sbr.rel (0) target = $region13
    $region12: #{bert_classify_forward.1} parent=1 // pred_region
      _
    $region13: #{bert_classify_forward.1} parent=1 // pred_fallthru
      _
    // Predicated region
    $region14: #{bert_classify_forward.1} parent=1 // pred_check
      _
    $region15: #{bert_classify_forward.1} parent=1 // pred_check_branch
      %22 = sbr.rel (0) target = $region17
    $region16: #{bert_classify_forward.1} parent=1 // pred_region
      _
    $region17: #{bert_classify_forward.1} parent=1 // pred_fallthru
      _
    // Predicated region
    $region18: #{bert_classify_forward.1} parent=1 // pred_check
      _
    $region19: #{bert_classify_forward.1} parent=1 // pred_check_branch
      %24 = sbr.rel (0) target = $region21
    $region20: #{bert_classify_forward.1} parent=1 // pred_region
      _
    $region21: #{bert_classify_forward.1} parent=1 // pred_fallthru
      _
    // Predicated region
    $region22: #{bert_classify_forward.1} parent=1 // pred_check
      _
    $region23: #{bert_classify_forward.1} parent=1 // pred_check_branch
      %26 = sbr.rel (0) target = $region25
    $region24: #{bert_classify_forward.1} parent=1 // pred_region
      _
    $region25: #{bert_classify_forward.1} parent=1 // pred_fallthru
      _
    // Predicated region
    $region26: #{bert_classify_forward.1} parent=1 // pred_check
      _
    $region27: #{bert_classify_forward.1} parent=1 // pred_check_branch
      %28 = sbr.rel (0) target = $region29
    $region28: #{bert_classify_forward.1} parent=1 // pred_region
      _
    $region29: #{bert_classify_forward.1} parent=1 // pred_fallthru
      _
    // Predicated region
    $region30: #{bert_classify_forward.1} parent=1 // pred_check
      _
    $region31: #{bert_classify_forward.1} parent=1 // pred_check_branch
      %30 = sbr.rel (0) target = $region33
    $region32: #{bert_classify_forward.1} parent=1 // pred_region
      _
    $region33: #{bert_classify_forward.1} parent=1 // pred_fallthru
      _
    // Predicated region
    $region34: #{bert_classify_forward.1} parent=1 // pred_check
      _
    $region35: #{bert_classify_forward.1} parent=1 // pred_check_branch
      %32 = sbr.rel (0) target = $region37
    $region36: #{bert_classify_forward.1} parent=1 // pred_region
      _
    $region37: #{bert_classify_forward.1} parent=1 // pred_fallthru
      _
    %v33 = vld [vmem:[%s1] sm:$0xff]
    %v34 = vld [vmem:[%s1 + $0x8] sm:$0xff]
    %v35 = vld [vmem:[%s1 + $0x10] sm:$0xff]
    %v36 = vld [vmem:[%s1 + $0x18] sm:$0xff]
    %v37 = vld [vmem:[%s0] sm:$0xff]
    %v38 = vld [vmem:[%s0 + $0x8] sm:$0xff]
    %v39 = vld [vmem:[%s6] sm:$0x1]
    %v40 = vld [vmem:[%s6 + $0x1] sm:$0x1]
    %vm41 = vcmask 261120
    %v42 = vsel %vm41, %v37, 0.0
    %43 = vadd.xlane.f32.xlu0 %v42
    %v44 = vpop.xlane.xlu0 %43
    %v45 = vsel %vm41, %v38, 0.0
    %46 = vadd.xlane.f32.xlu0 %v45
    %v47 = vpop.xlane.xlu0 %46
    %v48 = vrcp.pop 32.0
    %v49 = vmul.f32 %v44, %v48
    %v50 = vmul.f32 %v47, %v48
    %v51 = vsub.f32 %v37, %v49
    %v52 = vsub.f32 %v38, %v50
    %v53 = vmul.f32 %v51, %v51
    %v54 = vmul.f32 %v52, %v52
    %v55 = vsel %vm41, %v53, 0.0
    %56 = vadd.xlane.f32.xlu0 %v55
    %v57 = vpop.xlane.xlu0 %56
    %v58 = vsel %vm41, %v54, 0.0
    %59 = vadd.xlane.f32.xlu0 %v58
    %v60 = vpop.xlane.xlu0 %59
    %v61 = vmul.f32 %v57, %v48
    %v62 = vmul.f32 %v60, %v48
    %v63 = vadd.f32 %v61, 1e-12
    %v64 = vadd.f32 %v62, 1e-12
    %v65 = vrsqrt.pop %v63
    %v66 = vrsqrt.pop %v64
    %v67 = vmul.f32 %v51, %v65
    %v68 = vmul.f32 %v52, %v66
    %v69 = vlaneseq
    %v70 = vshrl.u32 %v69, 7
    %v71 = vsub.s32 0, %v70
    %v72 = vrot.slane %v39, %v71
    %v73 = vmul.f32 %v67, %v72
    %v74 = vmul.f32 %v68, %v72
    %v75 = vlaneseq
    %v76 = vshrl.u32 %v75, 7
    %v77 = vsub.s32 0, %v76
    %v78 = vrot.slane %v40, %v77
    %v79 = vadd.f32 %v73, %v78
    %v80 = vadd.f32 %v74, %v78
    %v81 = vld [vmem:[%s2] sm:$0xff]
    %v82 = vld [vmem:[%s2 + $0x8] sm:$0xff]
    %v83 = vld [vmem:[%s2 + $0x10] sm:$0xff]
    %v84 = vld [vmem:[%s2 + $0x18] sm:$0xff]
    %v85 = vld [vmem:[%s2 + $0x20] sm:$0xff]
    %v86 = vld [vmem:[%s2 + $0x28] sm:$0xff]
    %v87 = vld [vmem:[%s2 + $0x30] sm:$0xff]
    %v88 = vld [vmem:[%s2 + $0x38] sm:$0xff]
    %v89 = vld [vmem:[%s2 + $0x40] sm:$0xff]
    %v90 = vld [vmem:[%s2 + $0x48] sm:$0xff]
    %v91 = vld [vmem:[%s2 + $0x50] sm:$0xff]
    %v92 = vld [vmem:[%s2 + $0x58] sm:$0xff]
    %v93 = vld [vmem:[%s2 + $0x60] sm:$0xff]
    %v94 = vld [vmem:[%s2 + $0x68] sm:$0xff]
    %v95 = vld [vmem:[%s2 + $0x70] sm:$0xff]
    %v96 = vld [vmem:[%s2 + $0x78] sm:$0xff]
    %v97 = vld [vmem:[%s2 + $0x80] sm:$0xff]
    %v98 = vld [vmem:[%s2 + $0x88] sm:$0xff]
    %v99 = vld [vmem:[%s2 + $0x90] sm:$0xff]
    %v100 = vld [vmem:[%s2 + $0x98] sm:$0xff]
    %v101 = vld [vmem:[%s2 + $0xa0] sm:$0xff]
    %v102 = vld [vmem:[%s2 + $0xa8] sm:$0xff]
    %v103 = vld [vmem:[%s2 + $0xb0] sm:$0xff]
    %v104 = vld [vmem:[%s2 + $0xb8] sm:$0xff]
    %v105 = vld [vmem:[%s7] ss:$8 sm:$0xf]
    %v106 = vld [vmem:[%s7] ss:$8 sm:$0x30]
    %v107 = vor.u32 %v105, %v106
    %v109 = vlaneseq
    %v110 = vshrl.u32 %v109, 7
    %v111 = vsub.s32 0, %v110
    %v112 = vrot.slane %v107, %v111
    %v113 = vlaneseq
    %v114 = vshrl.u32 %v113, 7
    %v115 = vsub.s32 1, %v114
    %v116 = vrot.slane %v107, %v115
    %v117 = vlaneseq
    %v118 = vshrl.u32 %v117, 7
    %v119 = vsub.s32 2, %v118
    %v120 = vrot.slane %v107, %v119
    %v121 = vlaneseq
    %v122 = vshrl.u32 %v121, 7
    %v123 = vsub.s32 3, %v122
    %v124 = vrot.slane %v107, %v123
    %v125 = vlaneseq
    %v126 = vshrl.u32 %v125, 7
    %v127 = vsub.s32 4, %v126
    %v128 = vrot.slane %v107, %v127
    %v129 = vlaneseq
    %v130 = vshrl.u32 %v129, 7
    %v131 = vsub.s32 5, %v130
    %v132 = vrot.slane %v107, %v131
    %v140 = vsel %vm41, %v79, 0
    %v143 = vsel %vm41, %v80, 0
    %145 = vmatprep.subr.mxu0 %v82
    %146 = vmatpush1.msra.mxu0 %v81
    %147 = vmatprep.subr.mxu0 %v88
    %148 = vmatpush1.msra.mxu0 %v87
    %149 = vmatprep.subr.mxu0 %v94
    %150 = vmatpush1.msra.mxu0 %v93
    %151 = vmatprep.subr.mxu0 %v100
    %152 = vmatpush1.msra.mxu0 %v99
    %153 = vmatprep.subr.mxu0 0.0
    %154 = vmatpush1.msra.mxu0 0.0
    %155 = vmatprep.subr.mxu0 0.0
    %156 = vmatpush1.msra.mxu0 0.0
    %157 = vmatprep.subr.mxu0 0.0
    %158 = vmatpush1.msra.mxu0 0.0
    %159 = vmatprep.subr.mxu0 0.0
    %160 = vmatpush1.msra.mxu0 0.0
    %161 = vmatprep.subr.mxu0 0.0
    %162 = vmatpush1.msra.mxu0 0.0
    %163 = vmatprep.subr.mxu0 0.0
    %164 = vmatpush1.msra.mxu0 0.0
    %165 = vmatprep.subr.mxu0 0.0
    %166 = vmatpush1.msra.mxu0 0.0
    %167 = vmatprep.subr.mxu0 0.0
    %168 = vmatpush1.msra.mxu0 0.0
    %169 = vmatprep.subr.mxu0 0.0
    %170 = vmatpush1.msra.mxu0 0.0
    %171 = vmatprep.subr.mxu0 0.0
    %172 = vmatpush1.msra.mxu0 0.0
    %173 = vmatprep.subr.mxu0 0.0
    %174 = vmatpush1.msra.mxu0 0.0
    %175 = vmatprep.subr.mxu0 0.0
    %176 = vmatpush1.msra.mxu0 0.0
    %177 = vmatprep.subr.mxu0 0.0
    %178 = vmatpush1.msra.mxu0 0.0
    %179 = vmatprep.subr.mxu0 0.0
    %180 = vmatpush1.msra.mxu0 0.0
    %181 = vmatprep.subr.mxu0 0.0
    %182 = vmatpush1.msra.mxu0 0.0
    %183 = vmatprep.subr.mxu0 0.0
    %184 = vmatpush1.msra.mxu0 0.0
    %185 = vmatprep.subr.mxu0 0.0
    %186 = vmatpush1.msra.mxu0 0.0
    %187 = vmatprep.subr.mxu0 0.0
    %188 = vmatpush1.msra.mxu0 0.0
    %189 = vmatprep.subr.mxu0 0.0
    %190 = vmatpush1.msra.mxu0 0.0
    %191 = vmatprep.subr.mxu0 0.0
    %192 = vmatpush1.msra.mxu0 0.0
    %193 = vmatprep.subr.mxu0 0.0
    %194 = vmatpush1.msra.mxu0 0.0
    %195 = vmatprep.subr.mxu0 0.0
    %196 = vmatpush1.msra.mxu0 0.0
    %197 = vmatprep.subr.mxu0 0.0
    %198 = vmatpush1.msra.mxu0 0.0
    %199 = vmatprep.subr.mxu0 0.0
    %200 = vmatpush1.msra.mxu0 0.0
    %201 = vmatprep.subr.mxu0 0.0
    %202 = vmatpush1.msra.mxu0 0.0
    %203 = vmatprep.subr.mxu0 0.0
    %204 = vmatpush1.msra.mxu0 0.0
    %205 = vmatprep.subr.mxu0 0.0
    %206 = vmatpush1.msra.mxu0 0.0
    %207 = vmatprep.subr.mxu0 0.0
    %208 = vmatpush1.msra.mxu0 0.0
    %209 = vmatprep.mubr.f32.mxu0 0.0
    %210 = vmatmul.mubr.f32.gmra.mrb[0].mxu0 %v140
    %v211 = vpop.f32.mrb[0].mxu0
    %v212 = vadd.f32 %v112, %v211
    %v213 = vpop.f32.mrb[0].mxu0
    %v214 = vadd.f32 %v116, %v213
    %215 = vmatprep.mubr.f32.mxu0 0.0
    %216 = vmatmul.mubr.f32.gmra.mrb[0].mxu0 %v143
    %v217 = vpop.f32.mrb[0].mxu0
    %v218 = vadd.f32 %v112, %v217
    %v219 = vpop.f32.mrb[0].mxu0
    %v220 = vadd.f32 %v116, %v219
    %221 = vdwg.mxu0
    %222 = vmatprep.subr.mxu0 %v84
    %223 = vmatpush1.msra.mxu0 %v83
    %224 = vmatprep.subr.mxu0 %v90
    %225 = vmatpush1.msra.mxu0 %v89
    %226 = vmatprep.subr.mxu0 %v96
    %227 = vmatpush1.msra.mxu0 %v95
    %228 = vmatprep.subr.mxu0 %v102
    %229 = vmatpush1.msra.mxu0 %v101
    %230 = vmatprep.subr.mxu0 0.0
    %231 = vmatpush1.msra.mxu0 0.0
    %232 = vmatprep.subr.mxu0 0.0
    %233 = vmatpush1.msra.mxu0 0.0
    %234 = vmatprep.subr.mxu0 0.0
    %235 = vmatpush1.msra.mxu0 0.0
    %236 = vmatprep.subr.mxu0 0.0
    %237 = vmatpush1.msra.mxu0 0.0
    %238 = vmatprep.subr.mxu0 0.0
    %239 = vmatpush1.msra.mxu0 0.0
    %240 = vmatprep.subr.mxu0 0.0
    %241 = vmatpush1.msra.mxu0 0.0
    %242 = vmatprep.subr.mxu0 0.0
    %243 = vmatpush1.msra.mxu0 0.0
    %244 = vmatprep.subr.mxu0 0.0
    %245 = vmatpush1.msra.mxu0 0.0
    %246 = vmatprep.subr.mxu0 0.0
    %247 = vmatpush1.msra.mxu0 0.0
    %248 = vmatprep.subr.mxu0 0.0
    %249 = vmatpush1.msra.mxu0 0.0
    %250 = vmatprep.subr.mxu0 0.0
    %251 = vmatpush1.msra.mxu0 0.0
    %252 = vmatprep.subr.mxu0 0.0
    %253 = vmatpush1.msra.mxu0 0.0
    %254 = vmatprep.subr.mxu0 0.0
    %255 = vmatpush1.msra.mxu0 0.0
    %256 = vmatprep.subr.mxu0 0.0
    %257 = vmatpush1.msra.mxu0 0.0
    %258 = vmatprep.subr.mxu0 0.0
    %259 = vmatpush1.msra.mxu0 0.0
    %260 = vmatprep.subr.mxu0 0.0
    %261 = vmatpush1.msra.mxu0 0.0
    %262 = vmatprep.subr.mxu0 0.0
    %263 = vmatpush1.msra.mxu0 0.0
    %264 = vmatprep.subr.mxu0 0.0
    %265 = vmatpush1.msra.mxu0 0.0
    %266 = vmatprep.subr.mxu0 0.0
    %267 = vmatpush1.msra.mxu0 0.0
    %268 = vmatprep.subr.mxu0 0.0
    %269 = vmatpush1.msra.mxu0 0.0
    %270 = vmatprep.subr.mxu0 0.0
    %271 = vmatpush1.msra.mxu0 0.0
    %272 = vmatprep.subr.mxu0 0.0
    %273 = vmatpush1.msra.mxu0 0.0
    %274 = vmatprep.subr.mxu0 0.0
    %275 = vmatpush1.msra.mxu0 0.0
    %276 = vmatprep.subr.mxu0 0.0
    %277 = vmatpush1.msra.mxu0 0.0
    %278 = vmatprep.subr.mxu0 0.0
    %279 = vmatpush1.msra.mxu0 0.0
    %280 = vmatprep.subr.mxu0 0.0
    %281 = vmatpush1.msra.mxu0 0.0
    %282 = vmatprep.subr.mxu0 0.0
    %283 = vmatpush1.msra.mxu0 0.0
    %284 = vmatprep.subr.mxu0 0.0
    %285 = vmatpush1.msra.mxu0 0.0
    %286 = vmatprep.mubr.f32.mxu0 0.0
    %287 = vmatmul.mubr.f32.gmra.mrb[0].mxu0 %v140
    %v288 = vpop.f32.mrb[0].mxu0
    %v289 = vadd.f32 %v120, %v288
    %v290 = vpop.f32.mrb[0].mxu0
    %v291 = vadd.f32 %v124, %v290
    %292 = vmatprep.mubr.f32.mxu0 0.0
    %293 = vmatmul.mubr.f32.gmra.mrb[0].mxu0 %v143
    %v294 = vpop.f32.mrb[0].mxu0
    %v295 = vadd.f32 %v120, %v294
    %v296 = vpop.f32.mrb[0].mxu0
    %v297 = vadd.f32 %v124, %v296
    %298 = vdwg.mxu0
    %299 = vmatprep.subr.mxu0 %v86
    %300 = vmatpush1.msra.mxu0 %v85
    %301 = vmatprep.subr.mxu0 %v92
    %302 = vmatpush1.msra.mxu0 %v91
    %303 = vmatprep.subr.mxu0 %v98
    %304 = vmatpush1.msra.mxu0 %v97
    %305 = vmatprep.subr.mxu0 %v104
    %306 = vmatpush1.msra.mxu0 %v103
    %307 = vmatprep.subr.mxu0 0.0
    %308 = vmatpush1.msra.mxu0 0.0
    %309 = vmatprep.subr.mxu0 0.0
    %310 = vmatpush1.msra.mxu0 0.0
    %311 = vmatprep.subr.mxu0 0.0
    %312 = vmatpush1.msra.mxu0 0.0
    %313 = vmatprep.subr.mxu0 0.0
    %314 = vmatpush1.msra.mxu0 0.0
    %315 = vmatprep.subr.mxu0 0.0
    %316 = vmatpush1.msra.mxu0 0.0
    %317 = vmatprep.subr.mxu0 0.0
    %318 = vmatpush1.msra.mxu0 0.0
    %319 = vmatprep.subr.mxu0 0.0
    %320 = vmatpush1.msra.mxu0 0.0
    %321 = vmatprep.subr.mxu0 0.0
    %322 = vmatpush1.msra.mxu0 0.0
    %323 = vmatprep.subr.mxu0 0.0
    %324 = vmatpush1.msra.mxu0 0.0
    %325 = vmatprep.subr.mxu0 0.0
    %326 = vmatpush1.msra.mxu0 0.0
    %327 = vmatprep.subr.mxu0 0.0
    %328 = vmatpush1.msra.mxu0 0.0
    %329 = vmatprep.subr.mxu0 0.0
    %330 = vmatpush1.msra.mxu0 0.0
    %331 = vmatprep.subr.mxu0 0.0
    %332 = vmatpush1.msra.mxu0 0.0
    %333 = vmatprep.subr.mxu0 0.0
    %334 = vmatpush1.msra.mxu0 0.0
    %335 = vmatprep.subr.mxu0 0.0
    %336 = vmatpush1.msra.mxu0 0.0
    %337 = vmatprep.subr.mxu0 0.0
    %338 = vmatpush1.msra.mxu0 0.0
    %339 = vmatprep.subr.mxu0 0.0
    %340 = vmatpush1.msra.mxu0 0.0
    %341 = vmatprep.subr.mxu0 0.0
    %342 = vmatpush1.msra.mxu0 0.0
    %343 = vmatprep.subr.mxu0 0.0
    %344 = vmatpush1.msra.mxu0 0.0
    %345 = vmatprep.subr.mxu0 0.0
    %346 = vmatpush1.msra.mxu0 0.0
    %347 = vmatprep.subr.mxu0 0.0
    %348 = vmatpush1.msra.mxu0 0.0
    %349 = vmatprep.subr.mxu0 0.0
    %350 = vmatpush1.msra.mxu0 0.0
    %351 = vmatprep.subr.mxu0 0.0
    %352 = vmatpush1.msra.mxu0 0.0
    %353 = vmatprep.subr.mxu0 0.0
    %354 = vmatpush1.msra.mxu0 0.0
    %355 = vmatprep.subr.mxu0 0.0
    %356 = vmatpush1.msra.mxu0 0.0
    %357 = vmatprep.subr.mxu0 0.0
    %358 = vmatpush1.msra.mxu0 0.0
    %359 = vmatprep.subr.mxu0 0.0
    %360 = vmatpush1.msra.mxu0 0.0
    %361 = vmatprep.subr.mxu0 0.0
    %362 = vmatpush1.msra.mxu0 0.0
    %363 = vmatprep.mubr.f32.mxu0 0.0
    %364 = vmatmul.mubr.f32.gmra.mrb[0].mxu0 %v140
    %v365 = vpop.f32.mrb[0].mxu0
    %v366 = vadd.f32 %v128, %v365
    %v367 = vpop.f32.mrb[0].mxu0
    %v368 = vadd.f32 %v132, %v367
    %369 = vmatprep.mubr.f32.mxu0 0.0
    %370 = vmatmul.mubr.f32.gmra.mrb[0].mxu0 %v143
    %v371 = vpop.f32.mrb[0].mxu0
    %v372 = vadd.f32 %v128, %v371
    %v373 = vpop.f32.mrb[0].mxu0
    %v374 = vadd.f32 %v132, %v373
    %375 = vdwg.mxu0
    %376 = vmatprep.subr.mxu0 0.0
    %377 = vmatpush1.xpose.msra.mxu0 %v289
    %378 = vmatprep.subr.mxu0 0.0
    %379 = vmatpush1.xpose.msra.mxu0 %v295
    %380 = vmatprep.subr.mxu0 0.0
    %381 = vmatpush1.xpose.msra.mxu0 %v291
    %382 = vmatprep.subr.mxu0 0.0
    %383 = vmatpush1.xpose.msra.mxu0 %v297
    %384 = vmatprep.subr.mxu0 0.0
    %385 = vmatpush1.xpose.msra.mxu0 0.0
    %386 = vmatprep.subr.mxu0 0.0
    %387 = vmatpush1.xpose.msra.mxu0 0.0
    %388 = vmatprep.subr.mxu0 0.0
    %389 = vmatpush1.xpose.msra.mxu0 0.0
    %390 = vmatprep.subr.mxu0 0.0
    %391 = vmatpush1.xpose.msra.mxu0 0.0
    %392 = vmatprep.subr.mxu0 0.0
    %393 = vmatpush1.xpose.msra.mxu0 0.0
    %394 = vmatprep.subr.mxu0 0.0
    %395 = vmatpush1.xpose.msra.mxu0 0.0
    %396 = vmatprep.subr.mxu0 0.0
    %397 = vmatpush1.xpose.msra.mxu0 0.0
    %398 = vmatprep.subr.mxu0 0.0
    %399 = vmatpush1.xpose.msra.mxu0 0.0
    %400 = vmatprep.subr.mxu0 0.0
    %401 = vmatpush1.xpose.msra.mxu0 0.0
    %402 = vmatprep.subr.mxu0 0.0
    %403 = vmatpush1.xpose.msra.mxu0 0.0
    %404 = vmatprep.subr.mxu0 0.0
    %405 = vmatpush1.xpose.msra.mxu0 0.0
    %406 = vmatprep.subr.mxu0 0.0
    %407 = vmatpush1.xpose.msra.mxu0 0.0
    %408 = vmatprep.subr.mxu0 0.0
    %409 = vmatpush1.xpose.msra.mxu0 0.0
    %410 = vmatprep.subr.mxu0 0.0
    %411 = vmatpush1.xpose.msra.mxu0 0.0
    %412 = vmatprep.subr.mxu0 0.0
    %413 = vmatpush1.xpose.msra.mxu0 0.0
    %414 = vmatprep.subr.mxu0 0.0
    %415 = vmatpush1.xpose.msra.mxu0 0.0
    %416 = vmatprep.subr.mxu0 0.0
    %417 = vmatpush1.xpose.msra.mxu0 0.0
    %418 = vmatprep.subr.mxu0 0.0
    %419 = vmatpush1.xpose.msra.mxu0 0.0
    %420 = vmatprep.subr.mxu0 0.0
    %421 = vmatpush1.xpose.msra.mxu0 0.0
    %422 = vmatprep.subr.mxu0 0.0
    %423 = vmatpush1.xpose.msra.mxu0 0.0
    %424 = vmatprep.subr.mxu0 0.0
    %425 = vmatpush1.xpose.msra.mxu0 0.0
    %426 = vmatprep.subr.mxu0 0.0
    %427 = vmatpush1.xpose.msra.mxu0 0.0
    %428 = vmatprep.subr.mxu0 0.0
    %429 = vmatpush1.xpose.msra.mxu0 0.0
    %430 = vmatprep.subr.mxu0 0.0
    %431 = vmatpush1.xpose.msra.mxu0 0.0
    %432 = vmatprep.subr.mxu0 0.0
    %433 = vmatpush1.xpose.msra.mxu0 0.0
    %434 = vmatprep.subr.mxu0 0.0
    %435 = vmatpush1.xpose.msra.mxu0 0.0
    %436 = vmatprep.subr.mxu0 0.0
    %437 = vmatpush1.xpose.msra.mxu0 0.0
    %438 = vmatprep.subr.mxu0 0.0
    %439 = vmatpush1.xpose.msra.mxu0 0.0
    %440 = vmatprep.mubr.f32.mxu0 0.0
    %441 = vmatmul.mubr.f32.gmra.mrb[0].mxu0 %v212
    %v442 = vpop.f32.mrb[0].mxu0
    %v443 = vadd.f32 0.0, %v442
    %v444 = vpop.f32.mrb[0].mxu0
    %445 = vmatprep.mubr.f32.mxu0 0.0
    %446 = vmatmul.mubr.f32.gmra.mrb[0].mxu0 %v218
    %v447 = vpop.f32.mrb[0].mxu0
    %v448 = vadd.f32 0.0, %v447
    %v449 = vpop.f32.mrb[0].mxu0
    %450 = vmatprep.mubr.f32.mxu0 0.0
    %451 = vmatmul.mubr.f32.gmra.mrb[0].mxu0 %v214
    %v452 = vpop.f32.mrb[0].mxu0
    %v453 = vadd.f32 0.0, %v452
    %v454 = vpop.f32.mrb[0].mxu0
    %455 = vmatprep.mubr.f32.mxu0 0.0
    %456 = vmatmul.mubr.f32.gmra.mrb[0].mxu0 %v220
    %v457 = vpop.f32.mrb[0].mxu0
    %v458 = vadd.f32 0.0, %v457
    %v459 = vpop.f32.mrb[0].mxu0
    %460 = vdwg.mxu0
    %v461 = vmul.f32 %v443, 0.25
    %v462 = vmul.f32 %v448, 0.25
    %v463 = vmul.f32 %v453, 0.25
    %v464 = vmul.f32 %v458, 0.25
    %v465 = vadd.f32 %v461, %v33
    %v466 = vadd.f32 %v462, %v34
    %v467 = vadd.f32 %v463, %v35
    %v468 = vadd.f32 %v464, %v36
    %v469 = vsel %vm41, %v465, -inf
    %470 = vmax.xlane.f32.xlu0 %v469
    %v471 = vpop.xlane.xlu0 %470
    %v472 = vsel %vm41, %v466, -inf
    %473 = vmax.xlane.f32.xlu0 %v472
    %v474 = vpop.xlane.xlu0 %473
    %v475 = vsel %vm41, %v467, -inf
    %476 = vmax.xlane.f32.xlu0 %v475
    %v477 = vpop.xlane.xlu0 %476
    %v478 = vsel %vm41, %v468, -inf
    %479 = vmax.xlane.f32.xlu0 %v478
    %v480 = vpop.xlane.xlu0 %479
    %v481 = vsub.f32 %v465, %v471
    %v482 = vsub.f32 %v466, %v474
    %v483 = vsub.f32 %v467, %v477
    %v484 = vsub.f32 %v468, %v480
    %v485 = vmul.f32 %v481, 1.442695
    %v486 = vpow.pop %v485
    %v487 = vmul.f32 %v482, 1.442695
    %v488 = vpow.pop %v487
    %v489 = vmul.f32 %v483, 1.442695
    %v490 = vpow.pop %v489
    %v491 = vmul.f32 %v484, 1.442695
    %v492 = vpow.pop %v491
    %v493 = vsel %vm41, %v486, 0.0
    %494 = vadd.xlane.f32.xlu0 %v493
    %v495 = vpop.xlane.xlu0 %494
    %v496 = vsel %vm41, %v488, 0.0
    %497 = vadd.xlane.f32.xlu0 %v496
    %v498 = vpop.xlane.xlu0 %497
    %v499 = vsel %vm41, %v490, 0.0
    %500 = vadd.xlane.f32.xlu0 %v499
    %v501 = vpop.xlane.xlu0 %500
    %v502 = vsel %vm41, %v492, 0.0
    %503 = vadd.xlane.f32.xlu0 %v502
    %v504 = vpop.xlane.xlu0 %503
    %v505 = vrcp.pop %v495
    %v506 = vrcp.pop %v498
    %v507 = vrcp.pop %v501
    %v508 = vrcp.pop %v504
    %v509 = vmul.f32 %v486, %v505
    %v510 = vmul.f32 %v488, %v506
    %v511 = vmul.f32 %v490, %v507
    %v512 = vmul.f32 %v492, %v508
    %v514 = vsel %vm41, %v509, 0
    %v517 = vsel %vm41, %v510, 0
    %v520 = vsel %vm41, %v511, 0
    %v523 = vsel %vm41, %v512, 0
    %525 = vmatprep.subr.mxu0 0.0
    %526 = vmatpush1.msra.mxu0 %v366
    %527 = vmatprep.subr.mxu0 0.0
    %528 = vmatpush1.msra.mxu0 %v372
    %529 = vmatprep.subr.mxu0 0.0
    %530 = vmatpush1.msra.mxu0 %v368
    %531 = vmatprep.subr.mxu0 0.0
    %532 = vmatpush1.msra.mxu0 %v374
    %533 = vmatprep.subr.mxu0 0.0
    %534 = vmatpush1.msra.mxu0 0.0
    %535 = vmatprep.subr.mxu0 0.0
    %536 = vmatpush1.msra.mxu0 0.0
    %537 = vmatprep.subr.mxu0 0.0
    %538 = vmatpush1.msra.mxu0 0.0
    %539 = vmatprep.subr.mxu0 0.0
    %540 = vmatpush1.msra.mxu0 0.0
    %541 = vmatprep.subr.mxu0 0.0
    %542 = vmatpush1.msra.mxu0 0.0
    %543 = vmatprep.subr.mxu0 0.0
    %544 = vmatpush1.msra.mxu0 0.0
    %545 = vmatprep.subr.mxu0 0.0
    %546 = vmatpush1.msra.mxu0 0.0
    %547 = vmatprep.subr.mxu0 0.0
    %548 = vmatpush1.msra.mxu0 0.0
    %549 = vmatprep.subr.mxu0 0.0
    %550 = vmatpush1.msra.mxu0 0.0
    %551 = vmatprep.subr.mxu0 0.0
    %552 = vmatpush1.msra.mxu0 0.0
    %553 = vmatprep.subr.mxu0 0.0
    %554 = vmatpush1.msra.mxu0 0.0
    %555 = vmatprep.subr.mxu0 0.0
    %556 = vmatpush1.msra.mxu0 0.0
    %557 = vmatprep.subr.mxu0 0.0
    %558 = vmatpush1.msra.mxu0 0.0
    %559 = vmatprep.subr.mxu0 0.0
    %560 = vmatpush1.msra.mxu0 0.0
    %561 = vmatprep.subr.mxu0 0.0
    %562 = vmatpush1.msra.mxu0 0.0
    %563 = vmatprep.subr.mxu0 0.0
    %564 = vmatpush1.msra.mxu0 0.0
    %565 = vmatprep.subr.mxu0 0.0
    %566 = vmatpush1.msra.mxu0 0.0
    %567 = vmatprep.subr.mxu0 0.0
    %568 = vmatpush1.msra.mxu0 0.0
    %569 = vmatprep.subr.mxu0 0.0
    %570 = vmatpush1.msra.mxu0 0.0
    %571 = vmatprep.subr.mxu0 0.0
    %572 = vmatpush1.msra.mxu0 0.0
    %573 = vmatprep.subr.mxu0 0.0
    %574 = vmatpush1.msra.mxu0 0.0
    %575 = vmatprep.subr.mxu0 0.0
    %576 = vmatpush1.msra.mxu0 0.0
    %577 = vmatprep.subr.mxu0 0.0
    %578 = vmatpush1.msra.mxu0 0.0
    %579 = vmatprep.subr.mxu0 0.0
    %580 = vmatpush1.msra.mxu0 0.0
    %581 = vmatprep.subr.mxu0 0.0
    %582 = vmatpush1.msra.mxu0 0.0
    %583 = vmatprep.subr.mxu0 0.0
    %584 = vmatpush1.msra.mxu0 0.0
    %585 = vmatprep.subr.mxu0 0.0
    %586 = vmatpush1.msra.mxu0 0.0
    %587 = vmatprep.subr.mxu0 0.0
    %588 = vmatpush1.msra.mxu0 0.0
    %589 = vmatprep.mubr.f32.mxu0 0.0
    %590 = vmatmul.mubr.f32.gmra.mrb[0].mxu0 %v514
    %v591 = vpop.f32.mrb[0].mxu0
    %v592 = vadd.f32 0.0, %v591
    %v593 = vpop.f32.mrb[0].mxu0
    %594 = vmatprep.mubr.f32.mxu0 0.0
    %595 = vmatmul.mubr.f32.gmra.mrb[0].mxu0 %v517
    %v596 = vpop.f32.mrb[0].mxu0
    %v597 = vadd.f32 0.0, %v596
    %v598 = vpop.f32.mrb[0].mxu0
    %599 = vmatprep.mubr.f32.mxu0 0.0
    %600 = vmatmul.mubr.f32.gmra.mrb[0].mxu0 %v520
    %v601 = vpop.f32.mrb[0].mxu0
    %v602 = vadd.f32 0.0, %v601
    %v603 = vpop.f32.mrb[0].mxu0
    %604 = vmatprep.mubr.f32.mxu0 0.0
    %605 = vmatmul.mubr.f32.gmra.mrb[0].mxu0 %v523
    %v606 = vpop.f32.mrb[0].mxu0
    %v607 = vadd.f32 0.0, %v606
    %v608 = vpop.f32.mrb[0].mxu0
    %609 = vdwg.mxu0
    %v610 = vld [vmem:[%s3] sm:$0xff]
    %v611 = vld [vmem:[%s3 + $0x8] sm:$0xff]
    %v612 = vld [vmem:[%s3 + $0x10] sm:$0xff]
    %v613 = vld [vmem:[%s3 + $0x18] sm:$0xff]
    %v614 = vld [vmem:[%s3 + $0x20] sm:$0xff]
    %v615 = vld [vmem:[%s3 + $0x28] sm:$0xff]
    %v616 = vld [vmem:[%s3 + $0x30] sm:$0xff]
    %v617 = vld [vmem:[%s3 + $0x38] sm:$0xff]
    %v618 = vld [vmem:[%s3 + $0x40] sm:$0xff]
    %v619 = vld [vmem:[%s3 + $0x48] sm:$0xff]
    %v620 = vld [vmem:[%s3 + $0x50] sm:$0xff]
    %v621 = vld [vmem:[%s3 + $0x58] sm:$0xff]
    %v622 = vld [vmem:[%s3 + $0x60] sm:$0xff]
    %v623 = vld [vmem:[%s3 + $0x68] sm:$0xff]
    %v624 = vld [vmem:[%s3 + $0x70] sm:$0xff]
    %v625 = vld [vmem:[%s3 + $0x78] sm:$0xff]
    %v626 = vld [vmem:[%s3 + $0x80] sm:$0xff]
    %v627 = vld [vmem:[%s3 + $0x88] sm:$0xff]
    %v628 = vld [vmem:[%s3 + $0x90] sm:$0xff]
    %v629 = vld [vmem:[%s3 + $0x98] sm:$0xff]
    %v630 = vld [vmem:[%s3 + $0xa0] sm:$0xff]
    %v631 = vld [vmem:[%s3 + $0xa8] sm:$0xff]
    %v632 = vld [vmem:[%s3 + $0xb0] sm:$0xff]
    %v633 = vld [vmem:[%s3 + $0xb8] sm:$0xff]
    %v634 = vld [vmem:[%s3 + $0xc0] sm:$0xff]
    %v635 = vld [vmem:[%s3 + $0xc8] sm:$0xff]
    %v636 = vld [vmem:[%s3 + $0xd0] sm:$0xff]
    %v637 = vld [vmem:[%s3 + $0xd8] sm:$0xff]
    %v638 = vld [vmem:[%s3 + $0xe0] sm:$0xff]
    %v639 = vld [vmem:[%s3 + $0xe8] sm:$0xff]
    %v640 = vld [vmem:[%s3 + $0xf0] sm:$0xff]
    %v641 = vld [vmem:[%s3 + $0xf8] sm:$0xff]
    %v642 = vld [vmem:[%s6 + $0x2] sm:$0x1]
    %v643 = vlaneseq
    %v644 = vshrl.u32 %v643, 7
    %v645 = vsub.s32 0, %v644
    %v646 = vrot.slane %v642, %v645
    %647 = vmatprep.subr.mxu0 0.0
    %648 = vmatpush1.msra.mxu0 %v610
    %649 = vmatprep.subr.mxu0 0.0
    %650 = vmatpush1.msra.mxu0 %v611
    %651 = vmatprep.subr.mxu0 0.0
    %652 = vmatpush1.msra.mxu0 %v612
    %653 = vmatprep.subr.mxu0 0.0
    %654 = vmatpush1.msra.mxu0 %v613
    %655 = vmatprep.subr.mxu0 0.0
    %656 = vmatpush1.msra.mxu0 %v614
    %657 = vmatprep.subr.mxu0 0.0
    %658 = vmatpush1.msra.mxu0 %v615
    %659 = vmatprep.subr.mxu0 0.0
    %660 = vmatpush1.msra.mxu0 %v616
    %661 = vmatprep.subr.mxu0 0.0
    %662 = vmatpush1.msra.mxu0 %v617
    %663 = vmatprep.subr.mxu0 0.0
    %664 = vmatpush1.msra.mxu0 %v618
    %665 = vmatprep.subr.mxu0 0.0
    %666 = vmatpush1.msra.mxu0 %v619
    %667 = vmatprep.subr.mxu0 0.0
    %668 = vmatpush1.msra.mxu0 %v620
    %669 = vmatprep.subr.mxu0 0.0
    %670 = vmatpush1.msra.mxu0 %v621
    %671 = vmatprep.subr.mxu0 0.0
    %672 = vmatpush1.msra.mxu0 %v622
    %673 = vmatprep.subr.mxu0 0.0
    %674 = vmatpush1.msra.mxu0 %v623
    %675 = vmatprep.subr.mxu0 0.0
    %676 = vmatpush1.msra.mxu0 %v624
    %677 = vmatprep.subr.mxu0 0.0
    %678 = vmatpush1.msra.mxu0 %v625
    %679 = vmatprep.subr.mxu0 0.0
    %680 = vmatpush1.msra.mxu0 %v626
    %681 = vmatprep.subr.mxu0 0.0
    %682 = vmatpush1.msra.mxu0 %v627
    %683 = vmatprep.subr.mxu0 0.0
    %684 = vmatpush1.msra.mxu0 %v628
    %685 = vmatprep.subr.mxu0 0.0
    %686 = vmatpush1.msra.mxu0 %v629
    %687 = vmatprep.subr.mxu0 0.0
    %688 = vmatpush1.msra.mxu0 %v630
    %689 = vmatprep.subr.mxu0 0.0
    %690 = vmatpush1.msra.mxu0 %v631
    %691 = vmatprep.subr.mxu0 0.0
    %692 = vmatpush1.msra.mxu0 %v632
    %693 = vmatprep.subr.mxu0 0.0
    %694 = vmatpush1.msra.mxu0 %v633
    %695 = vmatprep.subr.mxu0 0.0
    %696 = vmatpush1.msra.mxu0 %v634
    %697 = vmatprep.subr.mxu0 0.0
    %698 = vmatpush1.msra.mxu0 %v635
    %699 = vmatprep.subr.mxu0 0.0
    %700 = vmatpush1.msra.mxu0 %v636
    %701 = vmatprep.subr.mxu0 0.0
    %702 = vmatpush1.msra.mxu0 %v637
    %703 = vmatprep.subr.mxu0 0.0
    %704 = vmatpush1.msra.mxu0 %v638
    %705 = vmatprep.subr.mxu0 0.0
    %706 = vmatpush1.msra.mxu0 %v639
    %707 = vmatprep.subr.mxu0 0.0
    %708 = vmatpush1.msra.mxu0 %v640
    %709 = vmatprep.subr.mxu0 0.0
    %710 = vmatpush1.msra.mxu0 %v641
    %711 = vmatprep.mubr.f32.mxu0 %v602
    %712 = vmatmul.mubr.f32.gmra.mrb[0].mxu0 %v592
    %v713 = vpop.f32.mrb[0].mxu0
    %v714 = vadd.f32 %v646, %v713
    %v715 = vpop.f32.mrb[0].mxu0
    %716 = vmatprep.mubr.f32.mxu0 %v607
    %717 = vmatmul.mubr.f32.gmra.mrb[0].mxu0 %v597
    %v718 = vpop.f32.mrb[0].mxu0
    %v719 = vadd.f32 %v646, %v718
    %v720 = vpop.f32.mrb[0].mxu0
    %721 = vdwg.mxu0
    %v722 = vadd.f32 %v714, %v79
    %v723 = vadd.f32 %v719, %v80
    %v724 = vld [vmem:[%s6 + $0x3] sm:$0x1]
    %v725 = vld [vmem:[%s6 + $0x4] sm:$0x1]
    %v726 = vsel %vm41, %v722, 0.0
    %727 = vadd.xlane.f32.xlu0 %v726
    %v728 = vpop.xlane.xlu0 %727
    %v729 = vsel %vm41, %v723, 0.0
    %730 = vadd.xlane.f32.xlu0 %v729
    %v731 = vpop.xlane.xlu0 %730
    %v732 = vmul.f32 %v728, %v48
    %v733 = vmul.f32 %v731, %v48
    %v734 = vsub.f32 %v722, %v732
    %v735 = vsub.f32 %v723, %v733
    %v736 = vmul.f32 %v734, %v734
    %v737 = vmul.f32 %v735, %v735
    %v738 = vsel %vm41, %v736, 0.0
    %739 = vadd.xlane.f32.xlu0 %v738
    %v740 = vpop.xlane.xlu0 %739
    %v741 = vsel %vm41, %v737, 0.0
    %742 = vadd.xlane.f32.xlu0 %v741
    %v743 = vpop.xlane.xlu0 %742
    %v744 = vmul.f32 %v740, %v48
    %v745 = vmul.f32 %v743, %v48
    %v746 = vadd.f32 %v744, 1e-12
    %v747 = vadd.f32 %v745, 1e-12
    %v748 = vrsqrt.pop %v746
    %v749 = vrsqrt.pop %v747
    %v750 = vmul.f32 %v734, %v748
    %v751 = vmul.f32 %v735, %v749
    %v752 = vlaneseq
    %v753 = vshrl.u32 %v752, 7
    %v754 = vsub.s32 0, %v753
    %v755 = vrot.slane %v724, %v754
    %v756 = vmul.f32 %v750, %v755
    %v757 = vmul.f32 %v751, %v755
    %v758 = vlaneseq
    %v759 = vshrl.u32 %v758, 7
    %v760 = vsub.s32 0, %v759
    %v761 = vrot.slane %v725, %v760
    %v762 = vadd.f32 %v756, %v761
    %v763 = vadd.f32 %v757, %v761
    %v764 = vld [vmem:[%s4] sm:$0xff]
    %v765 = vld [vmem:[%s4 + $0x8] sm:$0xff]
    %v766 = vld [vmem:[%s4 + $0x10] sm:$0xff]
    %v767 = vld [vmem:[%s4 + $0x18] sm:$0xff]
    %v768 = vld [vmem:[%s7 + $0x2] ss:$0 sm:$0xff]
    %v770 = vsel %vm41, %v762, 0
    %v773 = vsel %vm41, %v763, 0
    %775 = vmatprep.subr.mxu0 0.0
    %776 = vmatpush1.msra.mxu0 %v764
    %777 = vmatprep.subr.mxu0 0.0
    %778 = vmatpush1.msra.mxu0 %v765
    %779 = vmatprep.subr.mxu0 0.0
    %780 = vmatpush1.msra.mxu0 %v766
    %781 = vmatprep.subr.mxu0 0.0
    %782 = vmatpush1.msra.mxu0 %v767
    %783 = vmatprep.subr.mxu0 0.0
    %784 = vmatpush1.msra.mxu0 0.0
    %785 = vmatprep.subr.mxu0 0.0
    %786 = vmatpush1.msra.mxu0 0.0
    %787 = vmatprep.subr.mxu0 0.0
    %788 = vmatpush1.msra.mxu0 0.0
    %789 = vmatprep.subr.mxu0 0.0
    %790 = vmatpush1.msra.mxu0 0.0
    %791 = vmatprep.subr.mxu0 0.0
    %792 = vmatpush1.msra.mxu0 0.0
    %793 = vmatprep.subr.mxu0 0.0
    %794 = vmatpush1.msra.mxu0 0.0
    %795 = vmatprep.subr.mxu0 0.0
    %796 = vmatpush1.msra.mxu0 0.0
    %797 = vmatprep.subr.mxu0 0.0
    %798 = vmatpush1.msra.mxu0 0.0
    %799 = vmatprep.subr.mxu0 0.0
    %800 = vmatpush1.msra.mxu0 0.0
    %801 = vmatprep.subr.mxu0 0.0
    %802 = vmatpush1.msra.mxu0 0.0
    %803 = vmatprep.subr.mxu0 0.0
    %804 = vmatpush1.msra.mxu0 0.0
    %805 = vmatprep.subr.mxu0 0.0
    %806 = vmatpush1.msra.mxu0 0.0
    %807 = vmatprep.subr.mxu0 0.0
    %808 = vmatpush1.msra.mxu0 0.0
    %809 = vmatprep.subr.mxu0 0.0
    %810 = vmatpush1.msra.mxu0 0.0
    %811 = vmatprep.subr.mxu0 0.0
    %812 = vmatpush1.msra.mxu0 0.0
    %813 = vmatprep.subr.mxu0 0.0
    %814 = vmatpush1.msra.mxu0 0.0
    %815 = vmatprep.subr.mxu0 0.0
    %816 = vmatpush1.msra.mxu0 0.0
    %817 = vmatprep.subr.mxu0 0.0
    %818 = vmatpush1.msra.mxu0 0.0
    %819 = vmatprep.subr.mxu0 0.0
    %820 = vmatpush1.msra.mxu0 0.0
    %821 = vmatprep.subr.mxu0 0.0
    %822 = vmatpush1.msra.mxu0 0.0
    %823 = vmatprep.subr.mxu0 0.0
    %824 = vmatpush1.msra.mxu0 0.0
    %825 = vmatprep.subr.mxu0 0.0
    %826 = vmatpush1.msra.mxu0 0.0
    %827 = vmatprep.subr.mxu0 0.0
    %828 = vmatpush1.msra.mxu0 0.0
    %829 = vmatprep.subr.mxu0 0.0
    %830 = vmatpush1.msra.mxu0 0.0
    %831 = vmatprep.subr.mxu0 0.0
    %832 = vmatpush1.msra.mxu0 0.0
    %833 = vmatprep.subr.mxu0 0.0
    %834 = vmatpush1.msra.mxu0 0.0
    %835 = vmatprep.subr.mxu0 0.0
    %836 = vmatpush1.msra.mxu0 0.0
    %837 = vmatprep.subr.mxu0 0.0
    %838 = vmatpush1.msra.mxu0 0.0
    %839 = vmatprep.mubr.f32.mxu0 0.0
    %840 = vmatmul.mubr.f32.gmra.mrb[0].mxu0 %v770
    %v841 = vpop.f32.mrb[0].mxu0
    %v842 = vadd.f32 %v768, %v841
    %v843 = vpop.f32.mrb[0].mxu0
    %844 = vmatprep.mubr.f32.mxu0 0.0
    %845 = vmatmul.mubr.f32.gmra.mrb[0].mxu0 %v773
    %v846 = vpop.f32.mrb[0].mxu0
    %v847 = vadd.f32 %v768, %v846
    %v848 = vpop.f32.mrb[0].mxu0
    %849 = vdwg.mxu0
    %v850 = vmul.f32 %v842, 0.5
    %v851 = vmul.f32 %v847, 0.5
    %v852 = vmul.f32 %v842, 0.70710677
    %v853 = vmul.f32 %v847, 0.70710677
    %v854 = verf.f32.pop %v852
    %v855 = verf.f32.pop %v853
    %v856 = vadd.f32 %v854, 1.0
    %v857 = vadd.f32 %v855, 1.0
    %v858 = vmul.f32 %v850, %v856
    %v859 = vmul.f32 %v851, %v857
    %v860 = vld [vmem:[%s5] sm:$0xff]
    %v861 = vld [vmem:[%s5 + $0x8] sm:$0xff]
    %v862 = vld [vmem:[%s5 + $0x10] sm:$0xff]
    %v863 = vld [vmem:[%s5 + $0x18] sm:$0xff]
    %v864 = vld [vmem:[%s5 + $0x20] sm:$0xff]
    %v865 = vld [vmem:[%s5 + $0x28] sm:$0xff]
    %v866 = vld [vmem:[%s5 + $0x30] sm:$0xff]
    %v867 = vld [vmem:[%s5 + $0x38] sm:$0xff]
    %v868 = vld [vmem:[%s6 + $0x5] sm:$0x1]
    %v869 = vlaneseq
    %v870 = vshrl.u32 %v869, 7
    %v871 = vsub.s32 0, %v870
    %v872 = vrot.slane %v868, %v871
    %vm873 = vcmask 523264
    %v875 = vsel %vm873, %v858, 0
    %v878 = vsel %vm873, %v859, 0
    %880 = vmatprep.subr.mxu0 0.0
    %881 = vmatpush1.msra.mxu0 %v860
    %882 = vmatprep.subr.mxu0 0.0
    %883 = vmatpush1.msra.mxu0 %v861
    %884 = vmatprep.subr.mxu0 0.0
    %885 = vmatpush1.msra.mxu0 %v862
    %886 = vmatprep.subr.mxu0 0.0
    %887 = vmatpush1.msra.mxu0 %v863
    %888 = vmatprep.subr.mxu0 0.0
    %889 = vmatpush1.msra.mxu0 %v864
    %890 = vmatprep.subr.mxu0 0.0
    %891 = vmatpush1.msra.mxu0 %v865
    %892 = vmatprep.subr.mxu0 0.0
    %893 = vmatpush1.msra.mxu0 %v866
    %894 = vmatprep.subr.mxu0 0.0
    %895 = vmatpush1.msra.mxu0 %v867
    %896 = vmatprep.subr.mxu0 0.0
    %897 = vmatpush1.msra.mxu0 0.0
    %898 = vmatprep.subr.mxu0 0.0
    %899 = vmatpush1.msra.mxu0 0.0
    %900 = vmatprep.subr.mxu0 0.0
    %901 = vmatpush1.msra.mxu0 0.0
    %902 = vmatprep.subr.mxu0 0.0
    %903 = vmatpush1.msra.mxu0 0.0
    %904 = vmatprep.subr.mxu0 0.0
    %905 = vmatpush1.msra.mxu0 0.0
    %906 = vmatprep.subr.mxu0 0.0
    %907 = vmatpush1.msra.mxu0 0.0
    %908 = vmatprep.subr.mxu0 0.0
    %909 = vmatpush1.msra.mxu0 0.0
    %910 = vmatprep.subr.mxu0 0.0
    %911 = vmatpush1.msra.mxu0 0.0
    %912 = vmatprep.subr.mxu0 0.0
    %913 = vmatpush1.msra.mxu0 0.0
    %914 = vmatprep.subr.mxu0 0.0
    %915 = vmatpush1.msra.mxu0 0.0
    %916 = vmatprep.subr.mxu0 0.0
    %917 = vmatpush1.msra.mxu0 0.0
    %918 = vmatprep.subr.mxu0 0.0
    %919 = vmatpush1.msra.mxu0 0.0
    %920 = vmatprep.subr.mxu0 0.0
    %921 = vmatpush1.msra.mxu0 0.0
    %922 = vmatprep.subr.mxu0 0.0
    %923 = vmatpush1.msra.mxu0 0.0
    %924 = vmatprep.subr.mxu0 0.0
    %925 = vmatpush1.msra.mxu0 0.0
    %926 = vmatprep.subr.mxu0 0.0
    %927 = vmatpush1.msra.mxu0 0.0
    %928 = vmatprep.subr.mxu0 0.0
    %929 = vmatpush1.msra.mxu0 0.0
    %930 = vmatprep.subr.mxu0 0.0
    %931 = vmatpush1.msra.mxu0 0.0
    %932 = vmatprep.subr.mxu0 0.0
    %933 = vmatpush1.msra.mxu0 0.0
    %934 = vmatprep.subr.mxu0 0.0
    %935 = vmatpush1.msra.mxu0 0.0
    %936 = vmatprep.subr.mxu0 0.0
    %937 = vmatpush1.msra.mxu0 0.0
    %938 = vmatprep.subr.mxu0 0.0
    %939 = vmatpush1.msra.mxu0 0.0
    %940 = vmatprep.subr.mxu0 0.0
    %941 = vmatpush1.msra.mxu0 0.0
    %942 = vmatprep.subr.mxu0 0.0
    %943 = vmatpush1.msra.mxu0 0.0
    %944 = vmatprep.mubr.f32.mxu0 0.0
    %945 = vmatmul.mubr.f32.gmra.mrb[0].mxu0 %v875
    %v946 = vpop.f32.mrb[0].mxu0
    %v947 = vadd.f32 %v872, %v946
    %v948 = vpop.f32.mrb[0].mxu0
    %949 = vmatprep.mubr.f32.mxu0 0.0
    %950 = vmatmul.mubr.f32.gmra.mrb[0].mxu0 %v878
    %v951 = vpop.f32.mrb[0].mxu0
    %v952 = vadd.f32 %v872, %v951
    %v953 = vpop.f32.mrb[0].mxu0
    %954 = vdwg.mxu0
    %v955 = vadd.f32 %v947, %v762
    %v956 = vadd.f32 %v952, %v763
    %v957 = vld [vmem:[%s6 + $0x6] sm:$0x1]
    %v958 = vld [vmem:[%s6 + $0x7] sm:$0x1]
    %v959 = vsel %vm41, %v955, 0.0
    %960 = vadd.xlane.f32.xlu0 %v959
    %v961 = vpop.xlane.xlu0 %960
    %v962 = vsel %vm41, %v956, 0.0
    %963 = vadd.xlane.f32.xlu0 %v962
    %v964 = vpop.xlane.xlu0 %963
    %v965 = vmul.f32 %v961, %v48
    %v966 = vmul.f32 %v964, %v48
    %v967 = vsub.f32 %v955, %v965
    %v968 = vsub.f32 %v956, %v966
    %v969 = vmul.f32 %v967, %v967
    %v970 = vmul.f32 %v968, %v968
    %v971 = vsel %vm41, %v969, 0.0
    %972 = vadd.xlane.f32.xlu0 %v971
    %v973 = vpop.xlane.xlu0 %972
    %v974 = vsel %vm41, %v970, 0.0
    %975 = vadd.xlane.f32.xlu0 %v974
    %v976 = vpop.xlane.xlu0 %975
    %v977 = vmul.f32 %v973, %v48
    %v978 = vmul.f32 %v976, %v48
    %v979 = vadd.f32 %v977, 1e-12
    %v980 = vadd.f32 %v978, 1e-12
    %v981 = vrsqrt.pop %v979
    %v982 = vrsqrt.pop %v980
    %v983 = vmul.f32 %v967, %v981
    %v984 = vmul.f32 %v968, %v982
    %v985 = vlaneseq
    %v986 = vshrl.u32 %v985, 7
    %v987 = vsub.s32 0, %v986
    %v988 = vrot.slane %v957, %v987
    %v989 = vmul.f32 %v983, %v988
    %v990 = vmul.f32 %v984, %v988
    %v991 = vlaneseq
    %v992 = vshrl.u32 %v991, 7
    %v993 = vsub.s32 0, %v992
    %v994 = vrot.slane %v958, %v993
    %v995 = vadd.f32 %v989, %v994
    %v996 = vadd.f32 %v990, %v994
    %s997 = scalar_lea.vmem %s2, 192
    %v998 = vld [vmem:[%s997] sm:$0xff]
    %v999 = vld [vmem:[%s997 + $0x8] sm:$0xff]
    %v1000 = vld [vmem:[%s997 + $0x10] sm:$0xff]
    %v1001 = vld [vmem:[%s997 + $0x18] sm:$0xff]
    %v1002 = vld [vmem:[%s997 + $0x20] sm:$0xff]
    %v1003 = vld [vmem:[%s997 + $0x28] sm:$0xff]
    %v1004 = vld [vmem:[%s997 + $0x30] sm:$0xff]
    %v1005 = vld [vmem:[%s997 + $0x38] sm:$0xff]
    %v1006 = vld [vmem:[%s997 + $0x40] sm:$0xff]
    %v1007 = vld [vmem:[%s997 + $0x48] sm:$0xff]
    %v1008 = vld [vmem:[%s997 + $0x50] sm:$0xff]
    %v1009 = vld [vmem:[%s997 + $0x58] sm:$0xff]
    %v1010 = vld [vmem:[%s997 + $0x60] sm:$0xff]
    %v1011 = vld [vmem:[%s997 + $0x68] sm:$0xff]
    %v1012 = vld [vmem:[%s997 + $0x70] sm:$0xff]
    %v1013 = vld [vmem:[%s997 + $0x78] sm:$0xff]
    %v1014 = vld [vmem:[%s997 + $0x80] sm:$0xff]
    %v1015 = vld [vmem:[%s997 + $0x88] sm:$0xff]
    %v1016 = vld [vmem:[%s997 + $0x90] sm:$0xff]
    %v1017 = vld [vmem:[%s997 + $0x98] sm:$0xff]
    %v1018 = vld [vmem:[%s997 + $0xa0] sm:$0xff]
    %v1019 = vld [vmem:[%s997 + $0xa8] sm:$0xff]
    %v1020 = vld [vmem:[%s997 + $0xb0] sm:$0xff]
    %v1021 = vld [vmem:[%s997 + $0xb8] sm:$0xff]
    %s1022 = scalar_lea.vmem %s7, 1
    %v1023 = vld [vmem:[%s1022] ss:$8 sm:$0xf]
    %v1024 = vld [vmem:[%s1022] ss:$8 sm:$0x30]
    %v1025 = vor.u32 %v1023, %v1024
    %v1027 = vlaneseq
    %v1028 = vshrl.u32 %v1027, 7
    %v1029 = vsub.s32 0, %v1028
    %v1030 = vrot.slane %v1025, %v1029
    %v1031 = vlaneseq
    %v1032 = vshrl.u32 %v1031, 7
    %v1033 = vsub.s32 1, %v1032
    %v1034 = vrot.slane %v1025, %v1033
    %v1035 = vlaneseq
    %v1036 = vshrl.u32 %v1035, 7
    %v1037 = vsub.s32 2, %v1036
    %v1038 = vrot.slane %v1025, %v1037
    %v1039 = vlaneseq
    %v1040 = vshrl.u32 %v1039, 7
    %v1041 = vsub.s32 3, %v1040
    %v1042 = vrot.slane %v1025, %v1041
    %v1043 = vlaneseq
    %v1044 = vshrl.u32 %v1043, 7
    %v1045 = vsub.s32 4, %v1044
    %v1046 = vrot.slane %v1025, %v1045
    %v1047 = vlaneseq
    %v1048 = vshrl.u32 %v1047, 7
    %v1049 = vsub.s32 5, %v1048
    %v1050 = vrot.slane %v1025, %v1049
    %v1058 = vsel %vm41, %v995, 0
    %v1061 = vsel %vm41, %v996, 0
    %1063 = vmatprep.subr.mxu0 %v999
    %1064 = vmatpush1.msra.mxu0 %v998
    %1065 = vmatprep.subr.mxu0 %v1005
    %1066 = vmatpush1.msra.mxu0 %v1004
    %1067 = vmatprep.subr.mxu0 %v1011
    %1068 = vmatpush1.msra.mxu0 %v1010
    %1069 = vmatprep.subr.mxu0 %v1017
    %1070 = vmatpush1.msra.mxu0 %v1016
    %1071 = vmatprep.subr.mxu0 0.0
    %1072 = vmatpush1.msra.mxu0 0.0
    %1073 = vmatprep.subr.mxu0 0.0
    %1074 = vmatpush1.msra.mxu0 0.0
    %1075 = vmatprep.subr.mxu0 0.0
    %1076 = vmatpush1.msra.mxu0 0.0
    %1077 = vmatprep.subr.mxu0 0.0
    %1078 = vmatpush1.msra.mxu0 0.0
    %1079 = vmatprep.subr.mxu0 0.0
    %1080 = vmatpush1.msra.mxu0 0.0
    %1081 = vmatprep.subr.mxu0 0.0
    %1082 = vmatpush1.msra.mxu0 0.0
    %1083 = vmatprep.subr.mxu0 0.0
    %1084 = vmatpush1.msra.mxu0 0.0
    %1085 = vmatprep.subr.mxu0 0.0
    %1086 = vmatpush1.msra.mxu0 0.0
    %1087 = vmatprep.subr.mxu0 0.0
    %1088 = vmatpush1.msra.mxu0 0.0
    %1089 = vmatprep.subr.mxu0 0.0
    %1090 = vmatpush1.msra.mxu0 0.0
    %1091 = vmatprep.subr.mxu0 0.0
    %1092 = vmatpush1.msra.mxu0 0.0
    %1093 = vmatprep.subr.mxu0 0.0
    %1094 = vmatpush1.msra.mxu0 0.0
    %1095 = vmatprep.subr.mxu0 0.0
    %1096 = vmatpush1.msra.mxu0 0.0
    %1097 = vmatprep.subr.mxu0 0.0
    %1098 = vmatpush1.msra.mxu0 0.0
    %1099 = vmatprep.subr.mxu0 0.0
    %1100 = vmatpush1.msra.mxu0 0.0
    %1101 = vmatprep.subr.mxu0 0.0
    %1102 = vmatpush1.msra.mxu0 0.0
    %1103 = vmatprep.subr.mxu0 0.0
    %1104 = vmatpush1.msra.mxu0 0.0
    %1105 = vmatprep.subr.mxu0 0.0
    %1106 = vmatpush1.msra.mxu0 0.0
    %1107 = vmatprep.subr.mxu0 0.0
    %1108 = vmatpush1.msra.mxu0 0.0
    %1109 = vmatprep.subr.mxu0 0.0
    %1110 = vmatpush1.msra.mxu0 0.0
    %1111 = vmatprep.subr.mxu0 0.0
    %1112 = vmatpush1.msra.mxu0 0.0
    %1113 = vmatprep.subr.mxu0 0.0
    %1114 = vmatpush1.msra.mxu0 0.0
    %1115 = vmatprep.subr.mxu0 0.0
    %1116 = vmatpush1.msra.mxu0 0.0
    %1117 = vmatprep.subr.mxu0 0.0
    %1118 = vmatpush1.msra.mxu0 0.0
    %1119 = vmatprep.subr.mxu0 0.0
    %1120 = vmatpush1.msra.mxu0 0.0
    %1121 = vmatprep.subr.mxu0 0.0
    %1122 = vmatpush1.msra.mxu0 0.0
    %1123 = vmatprep.subr.mxu0 0.0
    %1124 = vmatpush1.msra.mxu0 0.0
    %1125 = vmatprep.subr.mxu0 0.0
    %1126 = vmatpush1.msra.mxu0 0.0
    %1127 = vmatprep.mubr.f32.mxu0 0.0
    %1128 = vmatmul.mubr.f32.gmra.mrb[0].mxu0 %v1058
    %v1129 = vpop.f32.mrb[0].mxu0
    %v1130 = vadd.f32 %v1030, %v1129
    %v1131 = vpop.f32.mrb[0].mxu0
    %v1132 = vadd.f32 %v1034, %v1131
    %1133 = vmatprep.mubr.f32.mxu0 0.0
    %1134 = vmatmul.mubr.f32.gmra.mrb[0].mxu0 %v1061
    %v1135 = vpop.f32.mrb[0].mxu0
    %v1136 = vadd.f32 %v1030, %v1135
    %v1137 = vpop.f32.mrb[0].mxu0
    %v1138 = vadd.f32 %v1034, %v1137
    %1139 = vdwg.mxu0
    %1140 = vmatprep.subr.mxu0 %v1001
    %1141 = vmatpush1.msra.mxu0 %v1000
    %1142 = vmatprep.subr.mxu0 %v1007
    %1143 = vmatpush1.msra.mxu0 %v1006
    %1144 = vmatprep.subr.mxu0 %v1013
    %1145 = vmatpush1.msra.mxu0 %v1012
    %1146 = vmatprep.subr.mxu0 %v1019
    %1147 = vmatpush1.msra.mxu0 %v1018
    %1148 = vmatprep.subr.mxu0 0.0
    %1149 = vmatpush1.msra.mxu0 0.0
    %1150 = vmatprep.subr.mxu0 0.0
    %1151 = vmatpush1.msra.mxu0 0.0
    %1152 = vmatprep.subr.mxu0 0.0
    %1153 = vmatpush1.msra.mxu0 0.0
    %1154 = vmatprep.subr.mxu0 0.0
    %1155 = vmatpush1.msra.mxu0 0.0
    %1156 = vmatprep.subr.mxu0 0.0
    %1157 = vmatpush1.msra.mxu0 0.0
    %1158 = vmatprep.subr.mxu0 0.0
    %1159 = vmatpush1.msra.mxu0 0.0
    %1160 = vmatprep.subr.mxu0 0.0
    %1161 = vmatpush1.msra.mxu0 0.0
    %1162 = vmatprep.subr.mxu0 0.0
    %1163 = vmatpush1.msra.mxu0 0.0
    %1164 = vmatprep.subr.mxu0 0.0
    %1165 = vmatpush1.msra.mxu0 0.0
    %1166 = vmatprep.subr.mxu0 0.0
    %1167 = vmatpush1.msra.mxu0 0.0
    %1168 = vmatprep.subr.mxu0 0.0
    %1169 = vmatpush1.msra.mxu0 0.0
    %1170 = vmatprep.subr.mxu0 0.0
    %1171 = vmatpush1.msra.mxu0 0.0
    %1172 = vmatprep.subr.mxu0 0.0
    %1173 = vmatpush1.msra.mxu0 0.0
    %1174 = vmatprep.subr.mxu0 0.0
    %1175 = vmatpush1.msra.mxu0 0.0
    %1176 = vmatprep.subr.mxu0 0.0
    %1177 = vmatpush1.msra.mxu0 0.0
    %1178 = vmatprep.subr.mxu0 0.0
    %1179 = vmatpush1.msra.mxu0 0.0
    %1180 = vmatprep.subr.mxu0 0.0
    %1181 = vmatpush1.msra.mxu0 0.0
    %1182 = vmatprep.subr.mxu0 0.0
    %1183 = vmatpush1.msra.mxu0 0.0
    %1184 = vmatprep.subr.mxu0 0.0
    %1185 = vmatpush1.msra.mxu0 0.0
    %1186 = vmatprep.subr.mxu0 0.0
    %1187 = vmatpush1.msra.mxu0 0.0
    %1188 = vmatprep.subr.mxu0 0.0
    %1189 = vmatpush1.msra.mxu0 0.0
    %1190 = vmatprep.subr.mxu0 0.0
    %1191 = vmatpush1.msra.mxu0 0.0
    %1192 = vmatprep.subr.mxu0 0.0
    %1193 = vmatpush1.msra.mxu0 0.0
    %1194 = vmatprep.subr.mxu0 0.0
    %1195 = vmatpush1.msra.mxu0 0.0
    %1196 = vmatprep.subr.mxu0 0.0
    %1197 = vmatpush1.msra.mxu0 0.0
    %1198 = vmatprep.subr.mxu0 0.0
    %1199 = vmatpush1.msra.mxu0 0.0
    %1200 = vmatprep.subr.mxu0 0.0
    %1201 = vmatpush1.msra.mxu0 0.0
    %1202 = vmatprep.subr.mxu0 0.0
    %1203 = vmatpush1.msra.mxu0 0.0
    %1204 = vmatprep.mubr.f32.mxu0 0.0
    %1205 = vmatmul.mubr.f32.gmra.mrb[0].mxu0 %v1058
    %v1206 = vpop.f32.mrb[0].mxu0
    %v1207 = vadd.f32 %v1038, %v1206
    %v1208 = vpop.f32.mrb[0].mxu0
    %v1209 = vadd.f32 %v1042, %v1208
    %1210 = vmatprep.mubr.f32.mxu0 0.0
    %1211 = vmatmul.mubr.f32.gmra.mrb[0].mxu0 %v1061
    %v1212 = vpop.f32.mrb[0].mxu0
    %v1213 = vadd.f32 %v1038, %v1212
    %v1214 = vpop.f32.mrb[0].mxu0
    %v1215 = vadd.f32 %v1042, %v1214
    %1216 = vdwg.mxu0
    %1217 = vmatprep.subr.mxu0 %v1003
    %1218 = vmatpush1.msra.mxu0 %v1002
    %1219 = vmatprep.subr.mxu0 %v1009
    %1220 = vmatpush1.msra.mxu0 %v1008
    %1221 = vmatprep.subr.mxu0 %v1015
    %1222 = vmatpush1.msra.mxu0 %v1014
    %1223 = vmatprep.subr.mxu0 %v1021
    %1224 = vmatpush1.msra.mxu0 %v1020
    %1225 = vmatprep.subr.mxu0 0.0
    %1226 = vmatpush1.msra.mxu0 0.0
    %1227 = vmatprep.subr.mxu0 0.0
    %1228 = vmatpush1.msra.mxu0 0.0
    %1229 = vmatprep.subr.mxu0 0.0
    %1230 = vmatpush1.msra.mxu0 0.0
    %1231 = vmatprep.subr.mxu0 0.0
    %1232 = vmatpush1.msra.mxu0 0.0
    %1233 = vmatprep.subr.mxu0 0.0
    %1234 = vmatpush1.msra.mxu0 0.0
    %1235 = vmatprep.subr.mxu0 0.0
    %1236 = vmatpush1.msra.mxu0 0.0
    %1237 = vmatprep.subr.mxu0 0.0
    %1238 = vmatpush1.msra.mxu0 0.0
    %1239 = vmatprep.subr.mxu0 0.0
    %1240 = vmatpush1.msra.mxu0 0.0
    %1241 = vmatprep.subr.mxu0 0.0
    %1242 = vmatpush1.msra.mxu0 0.0
    %1243 = vmatprep.subr.mxu0 0.0
    %1244 = vmatpush1.msra.mxu0 0.0
    %1245 = vmatprep.subr.mxu0 0.0
    %1246 = vmatpush1.msra.mxu0 0.0
    %1247 = vmatprep.subr.mxu0 0.0
    %1248 = vmatpush1.msra.mxu0 0.0
    %1249 = vmatprep.subr.mxu0 0.0
    %1250 = vmatpush1.msra.mxu0 0.0
    %1251 = vmatprep.subr.mxu0 0.0
    %1252 = vmatpush1.msra.mxu0 0.0
    %1253 = vmatprep.subr.mxu0 0.0
    %1254 = vmatpush1.msra.mxu0 0.0
    %1255 = vmatprep.subr.mxu0 0.0
    %1256 = vmatpush1.msra.mxu0 0.0
    %1257 = vmatprep.subr.mxu0 0.0
    %1258 = vmatpush1.msra.mxu0 0.0
    %1259 = vmatprep.subr.mxu0 0.0
    %1260 = vmatpush1.msra.mxu0 0.0
    %1261 = vmatprep.subr.mxu0 0.0
    %1262 = vmatpush1.msra.mxu0 0.0
    %1263 = vmatprep.subr.mxu0 0.0
    %1264 = vmatpush1.msra.mxu0 0.0
    %1265 = vmatprep.subr.mxu0 0.0
    %1266 = vmatpush1.msra.mxu0 0.0
    %1267 = vmatprep.subr.mxu0 0.0
    %1268 = vmatpush1.msra.mxu0 0.0
    %1269 = vmatprep.subr.mxu0 0.0
    %1270 = vmatpush1.msra.mxu0 0.0
    %1271 = vmatprep.subr.mxu0 0.0
    %1272 = vmatpush1.msra.mxu0 0.0
    %1273 = vmatprep.subr.mxu0 0.0
    %1274 = vmatpush1.msra.mxu0 0.0
    %1275 = vmatprep.subr.mxu0 0.0
    %1276 = vmatpush1.msra.mxu0 0.0
    %1277 = vmatprep.subr.mxu0 0.0
    %1278 = vmatpush1.msra.mxu0 0.0
    %1279 = vmatprep.subr.mxu0 0.0
    %1280 = vmatpush1.msra.mxu0 0.0
    %1281 = vmatprep.mubr.f32.mxu0 0.0
    %1282 = vmatmul.mubr.f32.gmra.mrb[0].mxu0 %v1058
    %v1283 = vpop.f32.mrb[0].mxu0
    %v1284 = vadd.f32 %v1046, %v1283
    %v1285 = vpop.f32.mrb[0].mxu0
    %v1286 = vadd.f32 %v1050, %v1285
    %1287 = vmatprep.mubr.f32.mxu0 0.0
    %1288 = vmatmul.mubr.f32.gmra.mrb[0].mxu0 %v1061
    %v1289 = vpop.f32.mrb[0].mxu0
    %v1290 = vadd.f32 %v1046, %v1289
    %v1291 = vpop.f32.mrb[0].mxu0
    %v1292 = vadd.f32 %v1050, %v1291
    %1293 = vdwg.mxu0
    %1294 = vmatprep.subr.mxu0 0.0
    %1295 = vmatpush1.xpose.msra.mxu0 %v1207
    %1296 = vmatprep.subr.mxu0 0.0
    %1297 = vmatpush1.xpose.msra.mxu0 %v1213
    %1298 = vmatprep.subr.mxu0 0.0
    %1299 = vmatpush1.xpose.msra.mxu0 %v1209
    %1300 = vmatprep.subr.mxu0 0.0
    %1301 = vmatpush1.xpose.msra.mxu0 %v1215
    %1302 = vmatprep.subr.mxu0 0.0
    %1303 = vmatpush1.xpose.msra.mxu0 0.0
    %1304 = vmatprep.subr.mxu0 0.0
    %1305 = vmatpush1.xpose.msra.mxu0 0.0
    %1306 = vmatprep.subr.mxu0 0.0
    %1307 = vmatpush1.xpose.msra.mxu0 0.0
    %1308 = vmatprep.subr.mxu0 0.0
    %1309 = vmatpush1.xpose.msra.mxu0 0.0
    %1310 = vmatprep.subr.mxu0 0.0
    %1311 = vmatpush1.xpose.msra.mxu0 0.0
    %1312 = vmatprep.subr.mxu0 0.0
    %1313 = vmatpush1.xpose.msra.mxu0 0.0
    %1314 = vmatprep.subr.mxu0 0.0
    %1315 = vmatpush1.xpose.msra.mxu0 0.0
    %1316 = vmatprep.subr.mxu0 0.0
    %1317 = vmatpush1.xpose.msra.mxu0 0.0
    %1318 = vmatprep.subr.mxu0 0.0
    %1319 = vmatpush1.xpose.msra.mxu0 0.0
    %1320 = vmatprep.subr.mxu0 0.0
    %1321 = vmatpush1.xpose.msra.mxu0 0.0
    %1322 = vmatprep.subr.mxu0 0.0
    %1323 = vmatpush1.xpose.msra.mxu0 0.0
    %1324 = vmatprep.subr.mxu0 0.0
    %1325 = vmatpush1.xpose.msra.mxu0 0.0
    %1326 = vmatprep.subr.mxu0 0.0
    %1327 = vmatpush1.xpose.msra.mxu0 0.0
    %1328 = vmatprep.subr.mxu0 0.0
    %1329 = vmatpush1.xpose.msra.mxu0 0.0
    %1330 = vmatprep.subr.mxu0 0.0
    %1331 = vmatpush1.xpose.msra.mxu0 0.0
    %1332 = vmatprep.subr.mxu0 0.0
    %1333 = vmatpush1.xpose.msra.mxu0 0.0
    %1334 = vmatprep.subr.mxu0 0.0
    %1335 = vmatpush1.xpose.msra.mxu0 0.0
    %1336 = vmatprep.subr.mxu0 0.0
    %1337 = vmatpush1.xpose.msra.mxu0 0.0
    %1338 = vmatprep.subr.mxu0 0.0
    %1339 = vmatpush1.xpose.msra.mxu0 0.0
    %1340 = vmatprep.subr.mxu0 0.0
    %1341 = vmatpush1.xpose.msra.mxu0 0.0
    %1342 = vmatprep.subr.mxu0 0.0
    %1343 = vmatpush1.xpose.msra.mxu0 0.0
    %1344 = vmatprep.subr.mxu0 0.0
    %1345 = vmatpush1.xpose.msra.mxu0 0.0
    %1346 = vmatprep.subr.mxu0 0.0
    %1347 = vmatpush1.xpose.msra.mxu0 0.0
    %1348 = vmatprep.subr.mxu0 0.0
    %1349 = vmatpush1.xpose.msra.mxu0 0.0
    %1350 = vmatprep.subr.mxu0 0.0
    %1351 = vmatpush1.xpose.msra.mxu0 0.0
    %1352 = vmatprep.subr.mxu0 0.0
    %1353 = vmatpush1.xpose.msra.mxu0 0.0
    %1354 = vmatprep.subr.mxu0 0.0
    %1355 = vmatpush1.xpose.msra.mxu0 0.0
    %1356 = vmatprep.subr.mxu0 0.0
    %1357 = vmatpush1.xpose.msra.mxu0 0.0
    %1358 = vmatprep.mubr.f32.mxu0 0.0
    %1359 = vmatmul.mubr.f32.gmra.mrb[0].mxu0 %v1130
    %v1360 = vpop.f32.mrb[0].mxu0
    %v1361 = vadd.f32 0.0, %v1360
    %v1362 = vpop.f32.mrb[0].mxu0
    %1363 = vmatprep.mubr.f32.mxu0 0.0
    %1364 = vmatmul.mubr.f32.gmra.mrb[0].mxu0 %v1136
    %v1365 = vpop.f32.mrb[0].mxu0
    %v1366 = vadd.f32 0.0, %v1365
    %v1367 = vpop.f32.mrb[0].mxu0
    %1368 = vmatprep.mubr.f32.mxu0 0.0
    %1369 = vmatmul.mubr.f32.gmra.mrb[0].mxu0 %v1132
    %v1370 = vpop.f32.mrb[0].mxu0
    %v1371 = vadd.f32 0.0, %v1370
    %v1372 = vpop.f32.mrb[0].mxu0
    %1373 = vmatprep.mubr.f32.mxu0 0.0
    %1374 = vmatmul.mubr.f32.gmra.mrb[0].mxu0 %v1138
    %v1375 = vpop.f32.mrb[0].mxu0
    %v1376 = vadd.f32 0.0, %v1375
    %v1377 = vpop.f32.mrb[0].mxu0
    %1378 = vdwg.mxu0
    %v1379 = vmul.f32 %v1361, 0.25
    %v1380 = vmul.f32 %v1366, 0.25
    %v1381 = vmul.f32 %v1371, 0.25
    %v1382 = vmul.f32 %v1376, 0.25
    %v1383 = vadd.f32 %v1379, %v33
    %v1384 = vadd.f32 %v1380, %v34
    %v1385 = vadd.f32 %v1381, %v35
    %v1386 = vadd.f32 %v1382, %v36
    %v1387 = vsel %vm41, %v1383, -inf
    %1388 = vmax.xlane.f32.xlu0 %v1387
    %v1389 = vpop.xlane.xlu0 %1388
    %v1390 = vsel %vm41, %v1384, -inf
    %1391 = vmax.xlane.f32.xlu0 %v1390
    %v1392 = vpop.xlane.xlu0 %1391
    %v1393 = vsel %vm41, %v1385, -inf
    %1394 = vmax.xlane.f32.xlu0 %v1393
    %v1395 = vpop.xlane.xlu0 %1394
    %v1396 = vsel %vm41, %v1386, -inf
    %1397 = vmax.xlane.f32.xlu0 %v1396
    %v1398 = vpop.xlane.xlu0 %1397
    %v1399 = vsub.f32 %v1383, %v1389
    %v1400 = vsub.f32 %v1384, %v1392
    %v1401 = vsub.f32 %v1385, %v1395
    %v1402 = vsub.f32 %v1386, %v1398
    %v1403 = vmul.f32 %v1399, 1.442695
    %v1404 = vpow.pop %v1403
    %v1405 = vmul.f32 %v1400, 1.442695
    %v1406 = vpow.pop %v1405
    %v1407 = vmul.f32 %v1401, 1.442695
    %v1408 = vpow.pop %v1407
    %v1409 = vmul.f32 %v1402, 1.442695
    %v1410 = vpow.pop %v1409
    %v1411 = vsel %vm41, %v1404, 0.0
    %1412 = vadd.xlane.f32.xlu0 %v1411
    %v1413 = vpop.xlane.xlu0 %1412
    %v1414 = vsel %vm41, %v1406, 0.0
    %1415 = vadd.xlane.f32.xlu0 %v1414
    %v1416 = vpop.xlane.xlu0 %1415
    %v1417 = vsel %vm41, %v1408, 0.0
    %1418 = vadd.xlane.f32.xlu0 %v1417
    %v1419 = vpop.xlane.xlu0 %1418
    %v1420 = vsel %vm41, %v1410, 0.0
    %1421 = vadd.xlane.f32.xlu0 %v1420
    %v1422 = vpop.xlane.xlu0 %1421
    %v1423 = vrcp.pop %v1413
    %v1424 = vrcp.pop %v1416
    %v1425 = vrcp.pop %v1419
    %v1426 = vrcp.pop %v1422
    %v1427 = vmul.f32 %v1404, %v1423
    %v1428 = vmul.f32 %v1406, %v1424
    %v1429 = vmul.f32 %v1408, %v1425
    %v1430 = vmul.f32 %v1410, %v1426
    %v1432 = vsel %vm41, %v1427, 0
    %v1435 = vsel %vm41, %v1428, 0
    %v1438 = vsel %vm41, %v1429, 0
    %v1441 = vsel %vm41, %v1430, 0
    %1443 = vmatprep.subr.mxu0 0.0
    %1444 = vmatpush1.msra.mxu0 %v1284
    %1445 = vmatprep.subr.mxu0 0.0
    %1446 = vmatpush1.msra.mxu0 %v1290
    %1447 = vmatprep.subr.mxu0 0.0
    %1448 = vmatpush1.msra.mxu0 %v1286
    %1449 = vmatprep.subr.mxu0 0.0
    %1450 = vmatpush1.msra.mxu0 %v1292
    %1451 = vmatprep.subr.mxu0 0.0
    %1452 = vmatpush1.msra.mxu0 0.0
    %1453 = vmatprep.subr.mxu0 0.0
    %1454 = vmatpush1.msra.mxu0 0.0
    %1455 = vmatprep.subr.mxu0 0.0
    %1456 = vmatpush1.msra.mxu0 0.0
    %1457 = vmatprep.subr.mxu0 0.0
    %1458 = vmatpush1.msra.mxu0 0.0
    %1459 = vmatprep.subr.mxu0 0.0
    %1460 = vmatpush1.msra.mxu0 0.0
    %1461 = vmatprep.subr.mxu0 0.0
    %1462 = vmatpush1.msra.mxu0 0.0
    %1463 = vmatprep.subr.mxu0 0.0
    %1464 = vmatpush1.msra.mxu0 0.0
    %1465 = vmatprep.subr.mxu0 0.0
    %1466 = vmatpush1.msra.mxu0 0.0
    %1467 = vmatprep.subr.mxu0 0.0
    %1468 = vmatpush1.msra.mxu0 0.0
    %1469 = vmatprep.subr.mxu0 0.0
    %1470 = vmatpush1.msra.mxu0 0.0
    %1471 = vmatprep.subr.mxu0 0.0
    %1472 = vmatpush1.msra.mxu0 0.0
    %1473 = vmatprep.subr.mxu0 0.0
    %1474 = vmatpush1.msra.mxu0 0.0
    %1475 = vmatprep.subr.mxu0 0.0
    %1476 = vmatpush1.msra.mxu0 0.0
    %1477 = vmatprep.subr.mxu0 0.0
    %1478 = vmatpush1.msra.mxu0 0.0
    %1479 = vmatprep.subr.mxu0 0.0
    %1480 = vmatpush1.msra.mxu0 0.0
    %1481 = vmatprep.subr.mxu0 0.0
    %1482 = vmatpush1.msra.mxu0 0.0
    %1483 = vmatprep.subr.mxu0 0.0
    %1484 = vmatpush1.msra.mxu0 0.0
    %1485 = vmatprep.subr.mxu0 0.0
    %1486 = vmatpush1.msra.mxu0 0.0
    %1487 = vmatprep.subr.mxu0 0.0
    %1488 = vmatpush1.msra.mxu0 0.0
    %1489 = vmatprep.subr.mxu0 0.0
    %1490 = vmatpush1.msra.mxu0 0.0
    %1491 = vmatprep.subr.mxu0 0.0
    %1492 = vmatpush1.msra.mxu0 0.0
    %1493 = vmatprep.subr.mxu0 0.0
    %1494 = vmatpush1.msra.mxu0 0.0
    %1495 = vmatprep.subr.mxu0 0.0
    %1496 = vmatpush1.msra.mxu0 0.0
    %1497 = vmatprep.subr.mxu0 0.0
    %1498 = vmatpush1.msra.mxu0 0.0
    %1499 = vmatprep.subr.mxu0 0.0
    %1500 = vmatpush1.msra.mxu0 0.0
    %1501 = vmatprep.subr.mxu0 0.0
    %1502 = vmatpush1.msra.mxu0 0.0
    %1503 = vmatprep.subr.mxu0 0.0
    %1504 = vmatpush1.msra.mxu0 0.0
    %1505 = vmatprep.subr.mxu0 0.0
    %1506 = vmatpush1.msra.mxu0 0.0
    %1507 = vmatprep.mubr.f32.mxu0 0.0
    %1508 = vmatmul.mubr.f32.gmra.mrb[0].mxu0 %v1432
    %v1509 = vpop.f32.mrb[0].mxu0
    %v1510 = vadd.f32 0.0, %v1509
    %v1511 = vpop.f32.mrb[0].mxu0
    %1512 = vmatprep.mubr.f32.mxu0 0.0
    %1513 = vmatmul.mubr.f32.gmra.mrb[0].mxu0 %v1435
    %v1514 = vpop.f32.mrb[0].mxu0
    %v1515 = vadd.f32 0.0, %v1514
    %v1516 = vpop.f32.mrb[0].mxu0
    %1517 = vmatprep.mubr.f32.mxu0 0.0
    %1518 = vmatmul.mubr.f32.gmra.mrb[0].mxu0 %v1438
    %v1519 = vpop.f32.mrb[0].mxu0
    %v1520 = vadd.f32 0.0, %v1519
    %v1521 = vpop.f32.mrb[0].mxu0
    %1522 = vmatprep.mubr.f32.mxu0 0.0
    %1523 = vmatmul.mubr.f32.gmra.mrb[0].mxu0 %v1441
    %v1524 = vpop.f32.mrb[0].mxu0
    %v1525 = vadd.f32 0.0, %v1524
    %v1526 = vpop.f32.mrb[0].mxu0
    %1527 = vdwg.mxu0
    %s1528 = scalar_lea.vmem %s3, 256
    %v1529 = vld [vmem:[%s1528] sm:$0xff]
    %v1530 = vld [vmem:[%s1528 + $0x8] sm:$0xff]
    %v1531 = vld [vmem:[%s1528 + $0x10] sm:$0xff]
    %v1532 = vld [vmem:[%s1528 + $0x18] sm:$0xff]
    %v1533 = vld [vmem:[%s1528 + $0x20] sm:$0xff]
    %v1534 = vld [vmem:[%s1528 + $0x28] sm:$0xff]
    %v1535 = vld [vmem:[%s1528 + $0x30] sm:$0xff]
    %v1536 = vld [vmem:[%s1528 + $0x38] sm:$0xff]
    %v1537 = vld [vmem:[%s1528 + $0x40] sm:$0xff]
    %v1538 = vld [vmem:[%s1528 + $0x48] sm:$0xff]
    %v1539 = vld [vmem:[%s1528 + $0x50] sm:$0xff]
    %v1540 = vld [vmem:[%s1528 + $0x58] sm:$0xff]
    %v1541 = vld [vmem:[%s1528 + $0x60] sm:$0xff]
    %v1542 = vld [vmem:[%s1528 + $0x68] sm:$0xff]
    %v1543 = vld [vmem:[%s1528 + $0x70] sm:$0xff]
    %v1544 = vld [vmem:[%s1528 + $0x78] sm:$0xff]
    %v1545 = vld [vmem:[%s1528 + $0x80] sm:$0xff]
    %v1546 = vld [vmem:[%s1528 + $0x88] sm:$0xff]
    %v1547 = vld [vmem:[%s1528 + $0x90] sm:$0xff]
    %v1548 = vld [vmem:[%s1528 + $0x98] sm:$0xff]
    %v1549 = vld [vmem:[%s1528 + $0xa0] sm:$0xff]
    %v1550 = vld [vmem:[%s1528 + $0xa8] sm:$0xff]
    %v1551 = vld [vmem:[%s1528 + $0xb0] sm:$0xff]
    %v1552 = vld [vmem:[%s1528 + $0xb8] sm:$0xff]
    %v1553 = vld [vmem:[%s1528 + $0xc0] sm:$0xff]
    %v1554 = vld [vmem:[%s1528 + $0xc8] sm:$0xff]
    %v1555 = vld [vmem:[%s1528 + $0xd0] sm:$0xff]
    %v1556 = vld [vmem:[%s1528 + $0xd8] sm:$0xff]
    %v1557 = vld [vmem:[%s1528 + $0xe0] sm:$0xff]
    %v1558 = vld [vmem:[%s1528 + $0xe8] sm:$0xff]
    %v1559 = vld [vmem:[%s1528 + $0xf0] sm:$0xff]
    %v1560 = vld [vmem:[%s1528 + $0xf8] sm:$0xff]
    %v1561 = vld [vmem:[%s6 + $0x8] sm:$0x1]
    %v1562 = vlaneseq
    %v1563 = vshrl.u32 %v1562, 7
    %v1564 = vsub.s32 0, %v1563
    %v1565 = vrot.slane %v1561, %v1564
    %1566 = vmatprep.subr.mxu0 0.0
    %1567 = vmatpush1.msra.mxu0 %v1529
    %1568 = vmatprep.subr.mxu0 0.0
    %1569 = vmatpush1.msra.mxu0 %v1530
    %1570 = vmatprep.subr.mxu0 0.0
    %1571 = vmatpush1.msra.mxu0 %v1531
    %1572 = vmatprep.subr.mxu0 0.0
    %1573 = vmatpush1.msra.mxu0 %v1532
    %1574 = vmatprep.subr.mxu0 0.0
    %1575 = vmatpush1.msra.mxu0 %v1533
    %1576 = vmatprep.subr.mxu0 0.0
    %1577 = vmatpush1.msra.mxu0 %v1534
    %1578 = vmatprep.subr.mxu0 0.0
    %1579 = vmatpush1.msra.mxu0 %v1535
    %1580 = vmatprep.subr.mxu0 0.0
    %1581 = vmatpush1.msra.mxu0 %v1536
    %1582 = vmatprep.subr.mxu0 0.0
    %1583 = vmatpush1.msra.mxu0 %v1537
    %1584 = vmatprep.subr.mxu0 0.0
    %1585 = vmatpush1.msra.mxu0 %v1538
    %1586 = vmatprep.subr.mxu0 0.0
    %1587 = vmatpush1.msra.mxu0 %v1539
    %1588 = vmatprep.subr.mxu0 0.0
    %1589 = vmatpush1.msra.mxu0 %v1540
    %1590 = vmatprep.subr.mxu0 0.0
    %1591 = vmatpush1.msra.mxu0 %v1541
    %1592 = vmatprep.subr.mxu0 0.0
    %1593 = vmatpush1.msra.mxu0 %v1542
    %1594 = vmatprep.subr.mxu0 0.0
    %1595 = vmatpush1.msra.mxu0 %v1543
    %1596 = vmatprep.subr.mxu0 0.0
    %1597 = vmatpush1.msra.mxu0 %v1544
    %1598 = vmatprep.subr.mxu0 0.0
    %1599 = vmatpush1.msra.mxu0 %v1545
    %1600 = vmatprep.subr.mxu0 0.0
    %1601 = vmatpush1.msra.mxu0 %v1546
    %1602 = vmatprep.subr.mxu0 0.0
    %1603 = vmatpush1.msra.mxu0 %v1547
    %1604 = vmatprep.subr.mxu0 0.0
    %1605 = vmatpush1.msra.mxu0 %v1548
    %1606 = vmatprep.subr.mxu0 0.0
    %1607 = vmatpush1.msra.mxu0 %v1549
    %1608 = vmatprep.subr.mxu0 0.0
    %1609 = vmatpush1.msra.mxu0 %v1550
    %1610 = vmatprep.subr.mxu0 0.0
    %1611 = vmatpush1.msra.mxu0 %v1551
    %1612 = vmatprep.subr.mxu0 0.0
    %1613 = vmatpush1.msra.mxu0 %v1552
    %1614 = vmatprep.subr.mxu0 0.0
    %1615 = vmatpush1.msra.mxu0 %v1553
    %1616 = vmatprep.subr.mxu0 0.0
    %1617 = vmatpush1.msra.mxu0 %v1554
    %1618 = vmatprep.subr.mxu0 0.0
    %1619 = vmatpush1.msra.mxu0 %v1555
    %1620 = vmatprep.subr.mxu0 0.0
    %1621 = vmatpush1.msra.mxu0 %v1556
    %1622 = vmatprep.subr.mxu0 0.0
    %1623 = vmatpush1.msra.mxu0 %v1557
    %1624 = vmatprep.subr.mxu0 0.0
    %1625 = vmatpush1.msra.mxu0 %v1558
    %1626 = vmatprep.subr.mxu0 0.0
    %1627 = vmatpush1.msra.mxu0 %v1559
    %1628 = vmatprep.subr.mxu0 0.0
    %1629 = vmatpush1.msra.mxu0 %v1560
    %1630 = vmatprep.mubr.f32.mxu0 %v1520
    %1631 = vmatmul.mubr.f32.gmra.mrb[0].mxu0 %v1510
    %v1632 = vpop.f32.mrb[0].mxu0
    %v1633 = vadd.f32 %v1565, %v1632
    %v1634 = vpop.f32.mrb[0].mxu0
    %1635 = vmatprep.mubr.f32.mxu0 %v1525
    %1636 = vmatmul.mubr.f32.gmra.mrb[0].mxu0 %v1515
    %v1637 = vpop.f32.mrb[0].mxu0
    %v1638 = vadd.f32 %v1565, %v1637
    %v1639 = vpop.f32.mrb[0].mxu0
    %1640 = vdwg.mxu0
    %v1641 = vadd.f32 %v1633, %v995
    %v1642 = vadd.f32 %v1638, %v996
    %v1643 = vld [vmem:[%s6 + $0x9] sm:$0x1]
    %v1644 = vld [vmem:[%s6 + $0xa] sm:$0x1]
    %v1645 = vsel %vm41, %v1641, 0.0
    %1646 = vadd.xlane.f32.xlu0 %v1645
    %v1647 = vpop.xlane.xlu0 %1646
    %v1648 = vsel %vm41, %v1642, 0.0
    %1649 = vadd.xlane.f32.xlu0 %v1648
    %v1650 = vpop.xlane.xlu0 %1649
    %v1651 = vmul.f32 %v1647, %v48
    %v1652 = vmul.f32 %v1650, %v48
    %v1653 = vsub.f32 %v1641, %v1651
    %v1654 = vsub.f32 %v1642, %v1652
    %v1655 = vmul.f32 %v1653, %v1653
    %v1656 = vmul.f32 %v1654, %v1654
    %v1657 = vsel %vm41, %v1655, 0.0
    %1658 = vadd.xlane.f32.xlu0 %v1657
    %v1659 = vpop.xlane.xlu0 %1658
    %v1660 = vsel %vm41, %v1656, 0.0
    %1661 = vadd.xlane.f32.xlu0 %v1660
    %v1662 = vpop.xlane.xlu0 %1661
    %v1663 = vmul.f32 %v1659, %v48
    %v1664 = vmul.f32 %v1662, %v48
    %v1665 = vadd.f32 %v1663, 1e-12
    %v1666 = vadd.f32 %v1664, 1e-12
    %v1667 = vrsqrt.pop %v1665
    %v1668 = vrsqrt.pop %v1666
    %v1669 = vmul.f32 %v1653, %v1667
    %v1670 = vmul.f32 %v1654, %v1668
    %v1671 = vlaneseq
    %v1672 = vshrl.u32 %v1671, 7
    %v1673 = vsub.s32 0, %v1672
    %v1674 = vrot.slane %v1643, %v1673
    %v1675 = vmul.f32 %v1669, %v1674
    %v1676 = vmul.f32 %v1670, %v1674
    %v1677 = vlaneseq
    %v1678 = vshrl.u32 %v1677, 7
    %v1679 = vsub.s32 0, %v1678
    %v1680 = vrot.slane %v1644, %v1679
    %v1681 = vadd.f32 %v1675, %v1680
    %v1682 = vadd.f32 %v1676, %v1680
    %s1683 = scalar_lea.vmem %s4, 32
    %v1684 = vld [vmem:[%s1683] sm:$0xff]
    %v1685 = vld [vmem:[%s1683 + $0x8] sm:$0xff]
    %v1686 = vld [vmem:[%s1683 + $0x10] sm:$0xff]
    %v1687 = vld [vmem:[%s1683 + $0x18] sm:$0xff]
    %v1688 = vld [vmem:[%s7 + $0x3] ss:$0 sm:$0xff]
    %v1690 = vsel %vm41, %v1681, 0
    %v1693 = vsel %vm41, %v1682, 0
    %1695 = vmatprep.subr.mxu0 0.0
    %1696 = vmatpush1.msra.mxu0 %v1684
    %1697 = vmatprep.subr.mxu0 0.0
    %1698 = vmatpush1.msra.mxu0 %v1685
    %1699 = vmatprep.subr.mxu0 0.0
    %1700 = vmatpush1.msra.mxu0 %v1686
    %1701 = vmatprep.subr.mxu0 0.0
    %1702 = vmatpush1.msra.mxu0 %v1687
    %1703 = vmatprep.subr.mxu0 0.0
    %1704 = vmatpush1.msra.mxu0 0.0
    %1705 = vmatprep.subr.mxu0 0.0
    %1706 = vmatpush1.msra.mxu0 0.0
    %1707 = vmatprep.subr.mxu0 0.0
    %1708 = vmatpush1.msra.mxu0 0.0
    %1709 = vmatprep.subr.mxu0 0.0
    %1710 = vmatpush1.msra.mxu0 0.0
    %1711 = vmatprep.subr.mxu0 0.0
    %1712 = vmatpush1.msra.mxu0 0.0
    %1713 = vmatprep.subr.mxu0 0.0
    %1714 = vmatpush1.msra.mxu0 0.0
    %1715 = vmatprep.subr.mxu0 0.0
    %1716 = vmatpush1.msra.mxu0 0.0
    %1717 = vmatprep.subr.mxu0 0.0
    %1718 = vmatpush1.msra.mxu0 0.0
    %1719 = vmatprep.subr.mxu0 0.0
    %1720 = vmatpush1.msra.mxu0 0.0
    %1721 = vmatprep.subr.mxu0 0.0
    %1722 = vmatpush1.msra.mxu0 0.0
    %1723 = vmatprep.subr.mxu0 0.0
    %1724 = vmatpush1.msra.mxu0 0.0
    %1725 = vmatprep.subr.mxu0 0.0
    %1726 = vmatpush1.msra.mxu0 0.0
    %1727 = vmatprep.subr.mxu0 0.0
    %1728 = vmatpush1.msra.mxu0 0.0
    %1729 = vmatprep.subr.mxu0 0.0
    %1730 = vmatpush1.msra.mxu0 0.0
    %1731 = vmatprep.subr.mxu0 0.0
    %1732 = vmatpush1.msra.mxu0 0.0
    %1733 = vmatprep.subr.mxu0 0.0
    %1734 = vmatpush1.msra.mxu0 0.0
    %1735 = vmatprep.subr.mxu0 0.0
    %1736 = vmatpush1.msra.mxu0 0.0
    %1737 = vmatprep.subr.mxu0 0.0
    %1738 = vmatpush1.msra.mxu0 0.0
    %1739 = vmatprep.subr.mxu0 0.0
    %1740 = vmatpush1.msra.mxu0 0.0
    %1741 = vmatprep.subr.mxu0 0.0
    %1742 = vmatpush1.msra.mxu0 0.0
    %1743 = vmatprep.subr.mxu0 0.0
    %1744 = vmatpush1.msra.mxu0 0.0
    %1745 = vmatprep.subr.mxu0 0.0
    %1746 = vmatpush1.msra.mxu0 0.0
    %1747 = vmatprep.subr.mxu0 0.0
    %1748 = vmatpush1.msra.mxu0 0.0
    %1749 = vmatprep.subr.mxu0 0.0
    %1750 = vmatpush1.msra.mxu0 0.0
    %1751 = vmatprep.subr.mxu0 0.0
    %1752 = vmatpush1.msra.mxu0 0.0
    %1753 = vmatprep.subr.mxu0 0.0
    %1754 = vmatpush1.msra.mxu0 0.0
    %1755 = vmatprep.subr.mxu0 0.0
    %1756 = vmatpush1.msra.mxu0 0.0
    %1757 = vmatprep.subr.mxu0 0.0
    %1758 = vmatpush1.msra.mxu0 0.0
    %1759 = vmatprep.mubr.f32.mxu0 0.0
    %1760 = vmatmul.mubr.f32.gmra.mrb[0].mxu0 %v1690
    %v1761 = vpop.f32.mrb[0].mxu0
    %v1762 = vadd.f32 %v1688, %v1761
    %v1763 = vpop.f32.mrb[0].mxu0
    %1764 = vmatprep.mubr.f32.mxu0 0.0
    %1765 = vmatmul.mubr.f32.gmra.mrb[0].mxu0 %v1693
    %v1766 = vpop.f32.mrb[0].mxu0
    %v1767 = vadd.f32 %v1688, %v1766
    %v1768 = vpop.f32.mrb[0].mxu0
    %1769 = vdwg.mxu0
    %v1770 = vmul.f32 %v1762, 0.5
    %v1771 = vmul.f32 %v1767, 0.5
    %v1772 = vmul.f32 %v1762, 0.70710677
    %v1773 = vmul.f32 %v1767, 0.70710677
    %v1774 = verf.f32.pop %v1772
    %v1775 = verf.f32.pop %v1773
    %v1776 = vadd.f32 %v1774, 1.0
    %v1777 = vadd.f32 %v1775, 1.0
    %v1778 = vmul.f32 %v1770, %v1776
    %v1779 = vmul.f32 %v1771, %v1777
    %s1780 = scalar_lea.vmem %s5, 64
    %v1781 = vld [vmem:[%s1780] sm:$0xff]
    %v1782 = vld [vmem:[%s1780 + $0x8] sm:$0xff]
    %v1783 = vld [vmem:[%s1780 + $0x10] sm:$0xff]
    %v1784 = vld [vmem:[%s1780 + $0x18] sm:$0xff]
    %v1785 = vld [vmem:[%s1780 + $0x20] sm:$0xff]
    %v1786 = vld [vmem:[%s1780 + $0x28] sm:$0xff]
    %v1787 = vld [vmem:[%s1780 + $0x30] sm:$0xff]
    %v1788 = vld [vmem:[%s1780 + $0x38] sm:$0xff]
    %v1789 = vld [vmem:[%s6 + $0xb] sm:$0x1]
    %v1790 = vlaneseq
    %v1791 = vshrl.u32 %v1790, 7
    %v1792 = vsub.s32 0, %v1791
    %v1793 = vrot.slane %v1789, %v1792
    %v1795 = vsel %vm873, %v1778, 0
    %v1798 = vsel %vm873, %v1779, 0
    %1800 = vmatprep.subr.mxu0 0.0
    %1801 = vmatpush1.msra.mxu0 %v1781
    %1802 = vmatprep.subr.mxu0 0.0
    %1803 = vmatpush1.msra.mxu0 %v1782
    %1804 = vmatprep.subr.mxu0 0.0
    %1805 = vmatpush1.msra.mxu0 %v1783
    %1806 = vmatprep.subr.mxu0 0.0
    %1807 = vmatpush1.msra.mxu0 %v1784
    %1808 = vmatprep.subr.mxu0 0.0
    %1809 = vmatpush1.msra.mxu0 %v1785
    %1810 = vmatprep.subr.mxu0 0.0
    %1811 = vmatpush1.msra.mxu0 %v1786
    %1812 = vmatprep.subr.mxu0 0.0
    %1813 = vmatpush1.msra.mxu0 %v1787
    %1814 = vmatprep.subr.mxu0 0.0
    %1815 = vmatpush1.msra.mxu0 %v1788
    %1816 = vmatprep.subr.mxu0 0.0
    %1817 = vmatpush1.msra.mxu0 0.0
    %1818 = vmatprep.subr.mxu0 0.0
    %1819 = vmatpush1.msra.mxu0 0.0
    %1820 = vmatprep.subr.mxu0 0.0
    %1821 = vmatpush1.msra.mxu0 0.0
    %1822 = vmatprep.subr.mxu0 0.0
    %1823 = vmatpush1.msra.mxu0 0.0
    %1824 = vmatprep.subr.mxu0 0.0
    %1825 = vmatpush1.msra.mxu0 0.0
    %1826 = vmatprep.subr.mxu0 0.0
    %1827 = vmatpush1.msra.mxu0 0.0
    %1828 = vmatprep.subr.mxu0 0.0
    %1829 = vmatpush1.msra.mxu0 0.0
    %1830 = vmatprep.subr.mxu0 0.0
    %1831 = vmatpush1.msra.mxu0 0.0
    %1832 = vmatprep.subr.mxu0 0.0
    %1833 = vmatpush1.msra.mxu0 0.0
    %1834 = vmatprep.subr.mxu0 0.0
    %1835 = vmatpush1.msra.mxu0 0.0
    %1836 = vmatprep.subr.mxu0 0.0
    %1837 = vmatpush1.msra.mxu0 0.0
    %1838 = vmatprep.subr.mxu0 0.0
    %1839 = vmatpush1.msra.mxu0 0.0
    %1840 = vmatprep.subr.mxu0 0.0
    %1841 = vmatpush1.msra.mxu0 0.0
    %1842 = vmatprep.subr.mxu0 0.0
    %1843 = vmatpush1.msra.mxu0 0.0
    %1844 = vmatprep.subr.mxu0 0.0
    %1845 = vmatpush1.msra.mxu0 0.0
    %1846 = vmatprep.subr.mxu0 0.0
    %1847 = vmatpush1.msra.mxu0 0.0
    %1848 = vmatprep.subr.mxu0 0.0
    %1849 = vmatpush1.msra.mxu0 0.0
    %1850 = vmatprep.subr.mxu0 0.0
    %1851 = vmatpush1.msra.mxu0 0.0
    %1852 = vmatprep.subr.mxu0 0.0
    %1853 = vmatpush1.msra.mxu0 0.0
    %1854 = vmatprep.subr.mxu0 0.0
    %1855 = vmatpush1.msra.mxu0 0.0
    %1856 = vmatprep.subr.mxu0 0.0
    %1857 = vmatpush1.msra.mxu0 0.0
    %1858 = vmatprep.subr.mxu0 0.0
    %1859 = vmatpush1.msra.mxu0 0.0
    %1860 = vmatprep.subr.mxu0 0.0
    %1861 = vmatpush1.msra.mxu0 0.0
    %1862 = vmatprep.subr.mxu0 0.0
    %1863 = vmatpush1.msra.mxu0 0.0
    %1864 = vmatprep.mubr.f32.mxu0 0.0
    %1865 = vmatmul.mubr.f32.gmra.mrb[0].mxu0 %v1795
    %v1866 = vpop.f32.mrb[0].mxu0
    %v1867 = vadd.f32 %v1793, %v1866
    %v1868 = vpop.f32.mrb[0].mxu0
    %1869 = vmatprep.mubr.f32.mxu0 0.0
    %1870 = vmatmul.mubr.f32.gmra.mrb[0].mxu0 %v1798
    %v1871 = vpop.f32.mrb[0].mxu0
    %v1872 = vadd.f32 %v1793, %v1871
    %v1873 = vpop.f32.mrb[0].mxu0
    %1874 = vdwg.mxu0
    %v1875 = vadd.f32 %v1867, %v1681
    %v1876 = vadd.f32 %v1872, %v1682
    %v1877 = vld [vmem:[%s6 + $0xc] sm:$0x1]
    %v1878 = vld [vmem:[%s6 + $0xd] sm:$0x1]
    %v1879 = vsel %vm41, %v1875, 0.0
    %1880 = vadd.xlane.f32.xlu0 %v1879
    %v1881 = vpop.xlane.xlu0 %1880
    %v1882 = vsel %vm41, %v1876, 0.0
    %1883 = vadd.xlane.f32.xlu0 %v1882
    %v1884 = vpop.xlane.xlu0 %1883
    %v1885 = vmul.f32 %v1881, %v48
    %v1886 = vmul.f32 %v1884, %v48
    %v1887 = vsub.f32 %v1875, %v1885
    %v1888 = vsub.f32 %v1876, %v1886
    %v1889 = vmul.f32 %v1887, %v1887
    %v1890 = vmul.f32 %v1888, %v1888
    %v1891 = vsel %vm41, %v1889, 0.0
    %1892 = vadd.xlane.f32.xlu0 %v1891
    %v1893 = vpop.xlane.xlu0 %1892
    %v1894 = vsel %vm41, %v1890, 0.0
    %1895 = vadd.xlane.f32.xlu0 %v1894
    %v1896 = vpop.xlane.xlu0 %1895
    %v1897 = vmul.f32 %v1893, %v48
    %v1898 = vmul.f32 %v1896, %v48
    %v1899 = vadd.f32 %v1897, 1e-12
    %v1900 = vadd.f32 %v1898, 1e-12
    %v1901 = vrsqrt.pop %v1899
    %v1902 = vrsqrt.pop %v1900
    %v1903 = vmul.f32 %v1887, %v1901
    %v1904 = vmul.f32 %v1888, %v1902
    %v1905 = vlaneseq
    %v1906 = vshrl.u32 %v1905, 7
    %v1907 = vsub.s32 0, %v1906
    %v1908 = vrot.slane %v1877, %v1907
    %v1909 = vmul.f32 %v1903, %v1908
    %v1910 = vmul.f32 %v1904, %v1908
    %v1911 = vlaneseq
    %v1912 = vshrl.u32 %v1911, 7
    %v1913 = vsub.s32 0, %v1912
    %v1914 = vrot.slane %v1878, %v1913
    %v1915 = vadd.f32 %v1909, %v1914
    %v1916 = vadd.f32 %v1910, %v1914
    %v1917 = vlaneseq
    %v1918 = vshrl.u32 %v1917, 7
    %v1919 = vlaneseq
    %v1920 = vand.u32 %v1919, 127
    %v1921 = vmul.u32 %v1918, 8
    %vm1922 = vcmp.eq.s32.totalorder %v1920, %v1921
    %v1923 = vsel %vm1922, 1, 0
    %v1924 = vcvt.s32.f32 %v1923
    %vm1925 = vcmask 130048
    %v1927 = vsel %vm1925, %v1924, 0
    %1929 = vmatprep.subr.mxu0 0.0
    %1930 = vmatpush1.msra.mxu0 %v1915
    %1931 = vmatprep.subr.mxu0 0.0
    %1932 = vmatpush1.msra.mxu0 %v1916
    %1933 = vmatprep.subr.mxu0 0.0
    %1934 = vmatpush1.msra.mxu0 0.0
    %1935 = vmatprep.subr.mxu0 0.0
    %1936 = vmatpush1.msra.mxu0 0.0
    %1937 = vmatprep.subr.mxu0 0.0
    %1938 = vmatpush1.msra.mxu0 0.0
    %1939 = vmatprep.subr.mxu0 0.0
    %1940 = vmatpush1.msra.mxu0 0.0
    %1941 = vmatprep.subr.mxu0 0.0
    %1942 = vmatpush1.msra.mxu0 0.0
    %1943 = vmatprep.subr.mxu0 0.0
    %1944 = vmatpush1.msra.mxu0 0.0
    %1945 = vmatprep.subr.mxu0 0.0
    %1946 = vmatpush1.msra.mxu0 0.0
    %1947 = vmatprep.subr.mxu0 0.0
    %1948 = vmatpush1.msra.mxu0 0.0
    %1949 = vmatprep.subr.mxu0 0.0
    %1950 = vmatpush1.msra.mxu0 0.0
    %1951 = vmatprep.subr.mxu0 0.0
    %1952 = vmatpush1.msra.mxu0 0.0
    %1953 = vmatprep.subr.mxu0 0.0
    %1954 = vmatpush1.msra.mxu0 0.0
    %1955 = vmatprep.subr.mxu0 0.0
    %1956 = vmatpush1.msra.mxu0 0.0
    %1957 = vmatprep.subr.mxu0 0.0
    %1958 = vmatpush1.msra.mxu0 0.0
    %1959 = vmatprep.subr.mxu0 0.0
    %1960 = vmatpush1.msra.mxu0 0.0
    %1961 = vmatprep.subr.mxu0 0.0
    %1962 = vmatpush1.msra.mxu0 0.0
    %1963 = vmatprep.subr.mxu0 0.0
    %1964 = vmatpush1.msra.mxu0 0.0
    %1965 = vmatprep.subr.mxu0 0.0
    %1966 = vmatpush1.msra.mxu0 0.0
    %1967 = vmatprep.subr.mxu0 0.0
    %1968 = vmatpush1.msra.mxu0 0.0
    %1969 = vmatprep.subr.mxu0 0.0
    %1970 = vmatpush1.msra.mxu0 0.0
    %1971 = vmatprep.subr.mxu0 0.0
    %1972 = vmatpush1.msra.mxu0 0.0
    %1973 = vmatprep.subr.mxu0 0.0
    %1974 = vmatpush1.msra.mxu0 0.0
    %1975 = vmatprep.subr.mxu0 0.0
    %1976 = vmatpush1.msra.mxu0 0.0
    %1977 = vmatprep.subr.mxu0 0.0
    %1978 = vmatpush1.msra.mxu0 0.0
    %1979 = vmatprep.subr.mxu0 0.0
    %1980 = vmatpush1.msra.mxu0 0.0
    %1981 = vmatprep.subr.mxu0 0.0
    %1982 = vmatpush1.msra.mxu0 0.0
    %1983 = vmatprep.subr.mxu0 0.0
    %1984 = vmatpush1.msra.mxu0 0.0
    %1985 = vmatprep.subr.mxu0 0.0
    %1986 = vmatpush1.msra.mxu0 0.0
    %1987 = vmatprep.subr.mxu0 0.0
    %1988 = vmatpush1.msra.mxu0 0.0
    %1989 = vmatprep.subr.mxu0 0.0
    %1990 = vmatpush1.msra.mxu0 0.0
    %1991 = vmatprep.subr.mxu0 0.0
    %1992 = vmatpush1.msra.mxu0 0.0
    %1993 = vmatprep.mubr.f32.mxu0 0.0
    %1994 = vmatmul.mubr.f32.gmra.mrb[0].mxu0 %v1927
    %v1995 = vpop.f32.mrb[0].mxu0
    %v1996 = vadd.f32 0.0, %v1995
    %v1997 = vpop.f32.mrb[0].mxu0
    %1998 = vdwg.mxu0
    %v1999 = vld [vmem:[%s8] sm:$0xff]
    %v2000 = vld [vmem:[%s8 + $0x10] sm:$0xff]
    %v2001 = vld [vmem:[%s8 + $0x20] sm:$0xff]
    %v2002 = vld [vmem:[%s8 + $0x30] sm:$0xff]
    %v2003 = vld [vmem:[%s8 + $0x8] sm:$0xff]
    %v2004 = vld [vmem:[%s8 + $0x18] sm:$0xff]
    %v2005 = vld [vmem:[%s8 + $0x28] sm:$0xff]
    %v2006 = vld [vmem:[%s8 + $0x38] sm:$0xff]
    %v2007 = vld [vmem:[%s6 + $0xe] sm:$0x1]
    %v2008 = vlaneseq
    %v2009 = vshrl.u32 %v2008, 7
    %v2010 = vsub.s32 0, %v2009
    %v2011 = vrot.slane %v2007, %v2010
    %v2013 = vsel %vm41, %v1996, 0
    %2015 = vmatprep.subr.mxu0 0.0
    %2016 = vmatpush1.msra.mxu0 %v1999
    %2017 = vmatprep.subr.mxu0 0.0
    %2018 = vmatpush1.msra.mxu0 %v2000
    %2019 = vmatprep.subr.mxu0 0.0
    %2020 = vmatpush1.msra.mxu0 %v2001
    %2021 = vmatprep.subr.mxu0 0.0
    %2022 = vmatpush1.msra.mxu0 %v2002
    %2023 = vmatprep.subr.mxu0 0.0
    %2024 = vmatpush1.msra.mxu0 0.0
    %2025 = vmatprep.subr.mxu0 0.0
    %2026 = vmatpush1.msra.mxu0 0.0
    %2027 = vmatprep.subr.mxu0 0.0
    %2028 = vmatpush1.msra.mxu0 0.0
    %2029 = vmatprep.subr.mxu0 0.0
    %2030 = vmatpush1.msra.mxu0 0.0
    %2031 = vmatprep.subr.mxu0 0.0
    %2032 = vmatpush1.msra.mxu0 0.0
    %2033 = vmatprep.subr.mxu0 0.0
    %2034 = vmatpush1.msra.mxu0 0.0
    %2035 = vmatprep.subr.mxu0 0.0
    %2036 = vmatpush1.msra.mxu0 0.0
    %2037 = vmatprep.subr.mxu0 0.0
    %2038 = vmatpush1.msra.mxu0 0.0
    %2039 = vmatprep.subr.mxu0 0.0
    %2040 = vmatpush1.msra.mxu0 0.0
    %2041 = vmatprep.subr.mxu0 0.0
    %2042 = vmatpush1.msra.mxu0 0.0
    %2043 = vmatprep.subr.mxu0 0.0
    %2044 = vmatpush1.msra.mxu0 0.0
    %2045 = vmatprep.subr.mxu0 0.0
    %2046 = vmatpush1.msra.mxu0 0.0
    %2047 = vmatprep.subr.mxu0 0.0
    %2048 = vmatpush1.msra.mxu0 0.0
    %2049 = vmatprep.subr.mxu0 0.0
    %2050 = vmatpush1.msra.mxu0 0.0
    %2051 = vmatprep.subr.mxu0 0.0
    %2052 = vmatpush1.msra.mxu0 0.0
    %2053 = vmatprep.subr.mxu0 0.0
    %2054 = vmatpush1.msra.mxu0 0.0
    %2055 = vmatprep.subr.mxu0 0.0
    %2056 = vmatpush1.msra.mxu0 0.0
    %2057 = vmatprep.subr.mxu0 0.0
    %2058 = vmatpush1.msra.mxu0 0.0
    %2059 = vmatprep.subr.mxu0 0.0
    %2060 = vmatpush1.msra.mxu0 0.0
    %2061 = vmatprep.subr.mxu0 0.0
    %2062 = vmatpush1.msra.mxu0 0.0
    %2063 = vmatprep.subr.mxu0 0.0
    %2064 = vmatpush1.msra.mxu0 0.0
    %2065 = vmatprep.subr.mxu0 0.0
    %2066 = vmatpush1.msra.mxu0 0.0
    %2067 = vmatprep.subr.mxu0 0.0
    %2068 = vmatpush1.msra.mxu0 0.0
    %2069 = vmatprep.subr.mxu0 0.0
    %2070 = vmatpush1.msra.mxu0 0.0
    %2071 = vmatprep.subr.mxu0 0.0
    %2072 = vmatpush1.msra.mxu0 0.0
    %2073 = vmatprep.subr.mxu0 0.0
    %2074 = vmatpush1.msra.mxu0 0.0
    %2075 = vmatprep.subr.mxu0 0.0
    %2076 = vmatpush1.msra.mxu0 0.0
    %2077 = vmatprep.subr.mxu0 0.0
    %2078 = vmatpush1.msra.mxu0 0.0
    %2079 = vmatprep.mubr.f32.mxu0 0.0
    %2080 = vmatmul.mubr.f32.gmra.mrb[0].mxu0 %v2013
    %v2081 = vpop.f32.mrb[0].mxu0
    %v2082 = vadd.f32 %v2011, %v2081
    %v2083 = vpop.f32.mrb[0].mxu0
    %2084 = vdwg.mxu0
    %v2085 = vtanh.pop %v2082
    %v2086 = vld [vmem:[%s7 + $0x4] ss:$0 sm:$0xff]
    %v2088 = vsel %vm41, %v2085, 0
    %2090 = vmatprep.subr.mxu0 0.0
    %2091 = vmatpush1.msra.mxu0 %v2003
    %2092 = vmatprep.subr.mxu0 0.0
    %2093 = vmatpush1.msra.mxu0 %v2004
    %2094 = vmatprep.subr.mxu0 0.0
    %2095 = vmatpush1.msra.mxu0 %v2005
    %2096 = vmatprep.subr.mxu0 0.0
    %2097 = vmatpush1.msra.mxu0 %v2006
    %2098 = vmatprep.subr.mxu0 0.0
    %2099 = vmatpush1.msra.mxu0 0.0
    %2100 = vmatprep.subr.mxu0 0.0
    %2101 = vmatpush1.msra.mxu0 0.0
    %2102 = vmatprep.subr.mxu0 0.0
    %2103 = vmatpush1.msra.mxu0 0.0
    %2104 = vmatprep.subr.mxu0 0.0
    %2105 = vmatpush1.msra.mxu0 0.0
    %2106 = vmatprep.subr.mxu0 0.0
    %2107 = vmatpush1.msra.mxu0 0.0
    %2108 = vmatprep.subr.mxu0 0.0
    %2109 = vmatpush1.msra.mxu0 0.0
    %2110 = vmatprep.subr.mxu0 0.0
    %2111 = vmatpush1.msra.mxu0 0.0
    %2112 = vmatprep.subr.mxu0 0.0
    %2113 = vmatpush1.msra.mxu0 0.0
    %2114 = vmatprep.subr.mxu0 0.0
    %2115 = vmatpush1.msra.mxu0 0.0
    %2116 = vmatprep.subr.mxu0 0.0
    %2117 = vmatpush1.msra.mxu0 0.0
    %2118 = vmatprep.subr.mxu0 0.0
    %2119 = vmatpush1.msra.mxu0 0.0
    %2120 = vmatprep.subr.mxu0 0.0
    %2121 = vmatpush1.msra.mxu0 0.0
    %2122 = vmatprep.subr.mxu0 0.0
    %2123 = vmatpush1.msra.mxu0 0.0
    %2124 = vmatprep.subr.mxu0 0.0
    %2125 = vmatpush1.msra.mxu0 0.0
    %2126 = vmatprep.subr.mxu0 0.0
    %2127 = vmatpush1.msra.mxu0 0.0
    %2128 = vmatprep.subr.mxu0 0.0
    %2129 = vmatpush1.msra.mxu0 0.0
    %2130 = vmatprep.subr.mxu0 0.0
    %2131 = vmatpush1.msra.mxu0 0.0
    %2132 = vmatprep.subr.mxu0 0.0
    %2133 = vmatpush1.msra.mxu0 0.0
    %2134 = vmatprep.subr.mxu0 0.0
    %2135 = vmatpush1.msra.mxu0 0.0
    %2136 = vmatprep.subr.mxu0 0.0
    %2137 = vmatpush1.msra.mxu0 0.0
    %2138 = vmatprep.subr.mxu0 0.0
    %2139 = vmatpush1.msra.mxu0 0.0
    %2140 = vmatprep.subr.mxu0 0.0
    %2141 = vmatpush1.msra.mxu0 0.0
    %2142 = vmatprep.subr.mxu0 0.0
    %2143 = vmatpush1.msra.mxu0 0.0
    %2144 = vmatprep.subr.mxu0 0.0
    %2145 = vmatpush1.msra.mxu0 0.0
    %2146 = vmatprep.subr.mxu0 0.0
    %2147 = vmatpush1.msra.mxu0 0.0
    %2148 = vmatprep.subr.mxu0 0.0
    %2149 = vmatpush1.msra.mxu0 0.0
    %2150 = vmatprep.subr.mxu0 0.0
    %2151 = vmatpush1.msra.mxu0 0.0
    %2152 = vmatprep.subr.mxu0 0.0
    %2153 = vmatpush1.msra.mxu0 0.0
    %2154 = vmatprep.mubr.f32.mxu0 0.0
    %2155 = vmatmul.mubr.f32.gmra.mrb[0].mxu0 %v2088
    %v2156 = vpop.f32.mrb[0].mxu0
    %v2157 = vadd.f32 %v2086, %v2156
    %v2158 = vpop.f32.mrb[0].mxu0
    %2159 = vdwg.mxu0
    %2160 = vst [vmem:[#allocation2] sm:$0x3] %v2157
    // Predicated region
    $region38: #{bert_classify_forward.1} parent=1 // pred_check
      _
    $region39: #{bert_classify_forward.1} parent=1 // pred_check_branch
      %2162 = sbr.rel (0) target = $region41
    $region40: #{bert_classify_forward.1} parent=1 // pred_region
      %s2164 = ssub.s32 32, 32
      %2165 = vsyncadd [#allocation3], %s2164
      %s2167 = sshll.u32 [#allocation2], 4
      %s2168 = int_to_ptr.vmem [resolvable:$true] %s2167
      %2170 = dma.vmem_to_hbm [thread:$0]  %s2168, 32, %s9, [#allocation3]
    $region41: #{bert_classify_forward.1} parent=1 // pred_fallthru
      _
    // Predicated region
    $region42: #{bert_classify_forward.1} parent=1 // pred_check
      _
    $region43: #{bert_classify_forward.1} parent=1 // pred_check_branch
      %2172 = sbr.rel (0) target = $region45
    $region44: #{bert_classify_forward.1} parent=1 // pred_region
      %2173 = dma.done [#allocation3], 32
    $region45: #{bert_classify_forward.1} parent=1 // pred_fallthru
      _
    %2174 = vsyncpa [#allocation3], 1

</llo_original>
